<compile_context>
chip_gen: v7x
topology: tpu7x:2x2x1
jax: 0.10.0
libtpu: 0.0.40
codegen_flags: <defaults>
</compile_context>

<pallas_src>
import functools

import numpy as np
import jax
import jax.numpy as jnp
from jax import lax
from jax.experimental import pallas as pl
from jax.experimental.pallas import tpu as pltpu

EPS = 1e-5
GROUPS = 8  # channel-shuffle group count from SplitPointMlp (g=8)


# --------------------------------------------------------------------------
# In-kernel building blocks
# --------------------------------------------------------------------------
def _layernorm_channels(x, w):
    # x: (C, N), channels on sublanes.  Bias-free LayerNorm over channels,
    # biased variance, eps=1e-5, per-channel weight w: (C, 1).
    # One-pass stats: mean and E[x^2] reduce independently (back-to-back XLU).
    mu = jnp.mean(x, axis=0, keepdims=True)
    m2 = jnp.mean(x * x, axis=0, keepdims=True)
    var = m2 - mu * mu
    return (x - mu) * lax.rsqrt(var + EPS) * w


def _split_point_mlp(xn, w1, b1, w2, b2, perm, ch):
    # xn: (C, N).  h = SiLU(w1 @ xn[:ch] + b1); y1 = w2 @ h + b2.
    # Output channel o takes y1[perm[o]] if perm[o] < ch else xn[perm[o]]
    # (the 'b (g d) h w -> b (d g) h w' shuffle + pass-through), realised as a
    # static sublane row-gather instead of 0/1 matmul columns -> DEFAULT
    # precision is safe and the pass-through half is an exact copy.
    h = jnp.dot(w1, xn[:ch, :], preferred_element_type=jnp.float32) + b1
    h = h * jax.nn.sigmoid(h)                               # SiLU
    y1 = jnp.dot(w2, h, preferred_element_type=jnp.float32) + b2
    rows = []
    for src in perm:
        rows.append(y1[src:src + 1, :] if src < ch else xn[src:src + 1, :])
    return jnp.concatenate(rows, axis=0)                    # (C, N)


def smlayer_kernel(xt_ref, xc_ref, xb_ref, rv_ref, cm_ref, vec_ref,
                   w1s_ref, w2s_ref, o_ref,
                   *, C, W, K, sr, hh, hidden_p, perm):
    p = K // 2
    ch = C // 2
    S = (sr + 2 * hh) * W                                   # halo-extended lanes

    # ---- assemble halo-extended input slab (C, S): [prev-halo | stripe | next-halo]
    x_slab = jnp.concatenate([xt_ref[0], xc_ref[0], xb_ref[0]], axis=1)

    # ---- coalesced small parameters -------------------------------------
    vec = vec_ref[...]                                      # (R, 7 + K*K)
    ln1_w = vec[:C, 0:1]
    ln2_w = vec[:C, 1:2]
    dw_b = vec[:C, 2:3]
    b1_1 = vec[:hidden_p, 3:4]
    b2_1 = vec[:ch, 4:5]
    b1_2 = vec[:hidden_p, 5:6]
    b2_2 = vec[:ch, 6:7]
    rv = rv_ref[0]                                          # (1, S) row validity
    cm = cm_ref[...]                                        # (K, 1, S) col masks

    # ---- norm1 + SplitPointMlp + residual --------------------------------
    xm = _split_point_mlp(_layernorm_channels(x_slab, ln1_w),
                          w1s_ref[0], b1_1, w2s_ref[0], b2_1, perm, ch) + x_slab
    # Zero out-of-image halo rows once (replaces a per-tap row mask).
    xm = xm * rv

    # ---- depthwise KxK conv (stride 1, SAME) via lane rolls + col masks --
    acc = jnp.broadcast_to(dw_b, (C, S))                    # init from bias
    for ki in range(K):
        for kj in range(K):
            di, dj = ki - p, kj - p
            sft = di * W + dj
            src = xm if sft == 0 else pltpu.roll(xm, shift=(-sft) % S, axis=1)
            t = src * vec[:C, 7 + ki * K + kj: 8 + ki * K + kj]   # tap (C,1)
            if dj != 0:                                     # center column mask is all-ones
                t = t * cm[kj]
            acc = acc + t
    xs = acc[:, hh * W: hh * W + sr * W]                    # interior rows only

    # ---- norm2 + SplitPointMlp + residual --------------------------------
    out = _split_point_mlp(_layernorm_channels(xs, ln2_w),
                           w1s_ref[1], b1_2, w2s_ref[1], b2_2, perm, ch) + xs
    o_ref[0] = out


# --------------------------------------------------------------------------
# Host-side parameter / mask packing
# --------------------------------------------------------------------------
def _prep_weights(params, C, K, hidden_p):
    ch = C // 2
    hidden = params["m1_w1"].shape[0]
    R = max(C, hidden_p)
    NV = 7 + K * K
    vec = np.zeros((R, NV), np.float32)
    vec[:C, 0] = np.asarray(params["ln1_w"]).ravel()
    vec[:C, 1] = np.asarray(params["ln2_w"]).ravel()
    vec[:C, 2] = np.asarray(params["dw_b"]).ravel()
    vec[:hidden, 3] = np.asarray(params["m1_b1"]).ravel()
    vec[:ch, 4] = np.asarray(params["m1_b2"]).ravel()
    vec[:hidden, 5] = np.asarray(params["m2_b1"]).ravel()
    vec[:ch, 6] = np.asarray(params["m2_b2"]).ravel()
    dw = np.asarray(params["dw_w"], np.float32)             # (K, K, C)
    for ki in range(K):
        for kj in range(K):
            vec[:C, 7 + ki * K + kj] = dw[ki, kj, :]

    w1s = np.zeros((2, hidden_p, ch), np.float32)           # padded rows -> silu(0)=0
    w1s[0, :hidden] = np.asarray(params["m1_w1"])
    w1s[1, :hidden] = np.asarray(params["m2_w1"])
    w2s = np.zeros((2, ch, hidden_p), np.float32)           # padded cols multiply zeros
    w2s[0, :, :hidden] = np.asarray(params["m1_w2"])
    w2s[1, :, :hidden] = np.asarray(params["m2_w2"])
    return jnp.asarray(vec), jnp.asarray(w1s), jnp.asarray(w2s)


def _prep_masks(H, W, K, sr, hh, ns):
    p = K // 2
    S = (sr + 2 * hh) * W
    lane = np.arange(S)
    col = lane % W
    col_masks = np.zeros((K, 1, S), np.float32)
    for kj in range(K):
        dj = kj - p
        col_masks[kj, 0] = ((col + dj >= 0) & (col + dj < W)).astype(np.float32)
    row_valid = np.zeros((ns, 1, S), np.float32)
    for s in range(ns):
        r_abs = s * sr - hh + lane // W
        row_valid[s, 0] = ((r_abs >= 0) & (r_abs < H)).astype(np.float32)
    return jnp.asarray(col_masks), jnp.asarray(row_valid)


def _choose_tiles(H, W, C, p, stripe_rows):
    # Stripe rows: divisor of H, lane-aligned (sr*W % 128 == 0) unless whole
    # image; biggest stripe whose f32 input slab stays under ~4 MiB.
    cands = [c for c in range(1, H + 1)
             if H % c == 0 and (c == H or (c * W) % 128 == 0)]
    if stripe_rows is None:
        budget = 4 << 20
        fitting = [c for c in cands if 4 * C * (c + 2 * p) * W <= budget]
        sr = max(fitting) if fitting else min(cands)
    else:
        sr = int(stripe_rows)
        assert H % sr == 0, "stripe_rows must divide H"
        assert sr == H or (sr * W) % 128 == 0, \
            "stripe_rows * W must be a multiple of 128 (lane-dense blocks)"
    # Halo source block rows: smallest lane-aligned row count >= pad dividing sr.
    hh = sr
    for cand in range(p, sr):
        if sr % cand == 0 and (cand * W) % 128 == 0:
            hh = cand
            break
    return sr, hh


# --------------------------------------------------------------------------
# Wrapper
# --------------------------------------------------------------------------
def smlayer_pallas(x_nchw, params, stripe_rows=None):
    B, C, H, W = x_nchw.shape
    assert C % GROUPS == 0 and C % 2 == 0
    HW = H * W
    K = params["dw_w"].shape[0]
    p = K // 2
    hidden = params["m1_w1"].shape[0]
    hidden_p = -(-hidden // 8) * 8                           # sublane multiple
    ch = C // 2

    sr, hh = _choose_tiles(H, W, C, p, stripe_rows)
    ns = H // sr
    rr = sr // hh
    n_hblk = H // hh
    S = (sr + 2 * hh) * W

    vec, w1s, w2s = _prep_weights(params, C, K, hidden_p)
    col_masks, row_valid = _prep_masks(H, W, K, sr, hh, ns)
    R, NV = vec.shape

    # Static channel-shuffle permutation: out[o] <- cat([y1; x2])[perm[o]].
    d = C // GROUPS
    perm = tuple((o % GROUPS) * d + (o // GROUPS) for o in range(C))

    x2d = x_nchw.reshape(B, C, HW).astype(jnp.float32)       # free: already NCHW

    # Three views of the same HBM array: stripe + lane-aligned prev/next halo
    # blocks (clamped at image edges; clamped rows are zeroed by row_valid).
    x_top_spec = pl.BlockSpec((1, C, hh * W),
                              lambda b, s: (b, 0, jnp.maximum(s * rr - 1, 0)))
    x_cur_spec = pl.BlockSpec((1, C, sr * W), lambda b, s: (b, 0, s))
    x_bot_spec = pl.BlockSpec((1, C, hh * W),
                              lambda b, s: (b, 0,
                                            jnp.minimum((s + 1) * rr, n_hblk - 1)))
    in_specs = [
        x_top_spec, x_cur_spec, x_bot_spec,
        pl.BlockSpec((1, 1, S), lambda b, s: (s, 0, 0)),          # row_valid
        pl.BlockSpec((K, 1, S), lambda b, s: (0, 0, 0)),          # col_masks
        pl.BlockSpec((R, NV), lambda b, s: (0, 0)),               # packed vectors
        pl.BlockSpec((2, hidden_p, ch), lambda b, s: (0, 0, 0)),  # w1 (both MLPs)
        pl.BlockSpec((2, ch, hidden_p), lambda b, s: (0, 0, 0)),  # w2 (both MLPs)
    ]
    out_specs = pl.BlockSpec((1, C, sr * W), lambda b, s: (b, 0, s))

    blk_bytes = 4 * C * S
    vmem_limit = int(min(48 << 20, max(32 << 20, 24 * blk_bytes)))

    out2d = pl.pallas_call(
        functools.partial(smlayer_kernel, C=C, W=W, K=K, sr=sr, hh=hh,
                          hidden_p=hidden_p, perm=perm),
        out_shape=jax.ShapeDtypeStruct((B, C, HW), jnp.float32),
        grid=(B, ns),
        in_specs=in_specs,
        out_specs=out_specs,
        compiler_params=pltpu.CompilerParams(
            dimension_semantics=("parallel", "parallel"),
            vmem_limit_bytes=vmem_limit),
    )(x2d, x2d, x2d, row_valid, col_masks, vec, w1s, w2s)
    return out2d.reshape(B, C, H, W)


# --------------------------------------------------------------------------
# Pure-JAX reference (mirrors PyTorch semantics, unfolded parameters)
# --------------------------------------------------------------------------
def smlayer_ref(x, params):
    B, C, H, W = x.shape
    K = params["dw_w"].shape[0]
    d = C // GROUPS

    def ln(t, w):
        mu = jnp.mean(t, axis=1, keepdims=True)
        var = jnp.mean((t - mu) ** 2, axis=1, keepdims=True)
        return (t - mu) / jnp.sqrt(var + EPS) * w.reshape(1, C, 1, 1)

    def split_mlp(t, w1, b1, w2, b2):
        ch = C // 2
        x1, x2 = t[:, :ch], t[:, ch:]
        h = jnp.einsum("oc,bchw->bohw", w1, x1,
                       precision=lax.Precision.HIGHEST) + b1.reshape(1, -1, 1, 1)
        h = jax.nn.silu(h)
        y1 = jnp.einsum("oc,bchw->bohw", w2, h,
                        precision=lax.Precision.HIGHEST) + b2.reshape(1, -1, 1, 1)
        cat = jnp.concatenate([y1, x2], axis=1)
        cat = cat.reshape(B, GROUPS, d, H, W)
        return jnp.transpose(cat, (0, 2, 1, 3, 4)).reshape(B, C, H, W)

    xm = split_mlp(ln(x, params["ln1_w"]),
                   params["m1_w1"], params["m1_b1"],
                   params["m1_w2"], params["m1_b2"]) + x
    kern = jnp.transpose(params["dw_w"], (2, 0, 1))[:, None, :, :]   # (C,1,K,K)
    xs = lax.conv_general_dilated(
        xm, kern, window_strides=(1, 1), padding="SAME",
        dimension_numbers=("NCHW", "OIHW", "NCHW"),
        feature_group_count=C,
        precision=lax.Precision.HIGHEST) + params["dw_b"].reshape(1, C, 1, 1)
    out = split_mlp(ln(xs, params["ln2_w"]),
                    params["m2_w1"], params["m2_b1"],
                    params["m2_w2"], params["m2_b2"]) + xs
    return out


# --------------------------------------------------------------------------
if __name__ == "__main__":
    # dim must be divisible by 8 (channel shuffle g=8); spatial sized so that
    # the striped path (stripe_rows=8 -> 4 stripes, 8 grid steps) is exercised.
    B, C, H, W = 2, 16, 32, 16
    K = 3
    hidden = int((C // 2) * 1.25)  # SplitPointMlp hidden dim = 10

    key = jax.random.PRNGKey(0)
    ks = jax.random.split(key, 16)
    f32 = jnp.float32

    params = {
        "ln1_w": 1.0 + 0.1 * jax.random.normal(ks[0], (C, 1), f32),
        "ln2_w": 1.0 + 0.1 * jax.random.normal(ks[1], (C, 1), f32),
        "m1_w1": 0.2 * jax.random.normal(ks[2], (hidden, C // 2), f32),
        "m1_b1": 0.05 * jax.random.normal(ks[3], (hidden, 1), f32),
        "m1_w2": 0.2 * jax.random.normal(ks[4], (C // 2, hidden), f32),
        "m1_b2": 0.05 * jax.random.normal(ks[5], (C // 2, 1), f32),
        "m2_w1": 0.2 * jax.random.normal(ks[6], (hidden, C // 2), f32),
        "m2_b1": 0.05 * jax.random.normal(ks[7], (hidden, 1), f32),
        "m2_w2": 0.2 * jax.random.normal(ks[8], (C // 2, hidden), f32),
        "m2_b2": 0.05 * jax.random.normal(ks[9], (C // 2, 1), f32),
        "dw_w": 0.2 * jax.random.normal(ks[10], (K, K, C), f32),
        "dw_b": 0.05 * jax.random.normal(ks[11], (C, 1), f32),
    }

    # PyTorch-style NCHW input — used directly (no transpose needed).
    x = jax.random.normal(ks[12], (B, C, H, W), f32)

    ref = smlayer_ref(x, params)

    # Striped path (H-stripe grid with halo, 4 stripes x 2 images = 8 steps).
    out_striped = jax.block_until_ready(smlayer_pallas(x, params, stripe_rows=8))
    # Auto tile selection (whole image fits the budget at this toy size).
    out_auto = jax.block_until_ready(smlayer_pallas(x, params))

    # Tolerance accounts for DEFAULT-precision (bf16-pass) MXU matmuls vs the
    # HIGHEST-precision reference.
    np.testing.assert_allclose(np.asarray(out_striped), np.asarray(ref),
                               atol=2e-2, rtol=2e-2)
    np.testing.assert_allclose(np.asarray(out_auto), np.asarray(ref),
                               atol=2e-2, rtol=2e-2)
    print("KERNEL_OK")
</pallas_src>

<mosaic_0001>
module attributes {stable_mosaic.version = 11 : i64} {
  func.func @smlayer_kernel(%arg0: i32, %arg1: i32, %arg2: memref<1x16x128xf32, #tpu.memory_space<vmem>>, %arg3: memref<1x16x128xf32, #tpu.memory_space<vmem>>, %arg4: memref<1x16x128xf32, #tpu.memory_space<vmem>>, %arg5: memref<1x1x384xf32, #tpu.memory_space<vmem>>, %arg6: memref<3x1x384xf32, #tpu.memory_space<vmem>>, %arg7: memref<16x16xf32, #tpu.memory_space<vmem>>, %arg8: memref<2x16x8xf32, #tpu.memory_space<vmem>>, %arg9: memref<2x8x16xf32, #tpu.memory_space<vmem>>, %arg10: memref<1x16x128xf32, #tpu.memory_space<vmem>>) attributes {dimension_semantics = [#tpu.dimension_semantics<parallel>, #tpu.dimension_semantics<parallel>], iteration_bounds = array<i64: 2, 4>, scalar_prefetch = 0 : i64, scratch_operands = 0 : i64, tpu.core_type = #tpu.core_type<tc>, window_params = [{transform_indices = @transform_0, window_bounds = array<i64: 1, 16, 128>}, {transform_indices = @transform_1, window_bounds = array<i64: 1, 16, 128>}, {transform_indices = @transform_2, window_bounds = array<i64: 1, 16, 128>}, {transform_indices = @transform_3, window_bounds = array<i64: 1, 1, 384>}, {pipeline_mode = #tpu.pipeline_mode<synchronous>, transform_indices = @transform_4, window_bounds = array<i64: 3, 1, 384>}, {pipeline_mode = #tpu.pipeline_mode<synchronous>, transform_indices = @transform_5, window_bounds = array<i64: 16, 16>}, {pipeline_mode = #tpu.pipeline_mode<synchronous>, transform_indices = @transform_6, window_bounds = array<i64: 2, 16, 8>}, {pipeline_mode = #tpu.pipeline_mode<synchronous>, transform_indices = @transform_7, window_bounds = array<i64: 2, 8, 16>}, {transform_indices = @transform_8, window_bounds = array<i64: 1, 16, 128>}]} {
    %c0 = arith.constant 0 : index
    %c0_0 = arith.constant 0 : index
    %c0_1 = arith.constant 0 : index
    %0 = vector.load %arg2[%c0, %c0_0, %c0_1] : memref<1x16x128xf32, #tpu.memory_space<vmem>>, vector<1x16x128xf32>
    %1 = vector.shape_cast %0 : vector<1x16x128xf32> to vector<16x128xf32>
    %c0_2 = arith.constant 0 : index
    %c0_3 = arith.constant 0 : index
    %c0_4 = arith.constant 0 : index
    %2 = vector.load %arg3[%c0_2, %c0_3, %c0_4] : memref<1x16x128xf32, #tpu.memory_space<vmem>>, vector<1x16x128xf32>
    %3 = vector.shape_cast %2 : vector<1x16x128xf32> to vector<16x128xf32>
    %c0_5 = arith.constant 0 : index
    %c0_6 = arith.constant 0 : index
    %c0_7 = arith.constant 0 : index
    %4 = vector.load %arg4[%c0_5, %c0_6, %c0_7] : memref<1x16x128xf32, #tpu.memory_space<vmem>>, vector<1x16x128xf32>
    %5 = vector.shape_cast %4 : vector<1x16x128xf32> to vector<16x128xf32>
    %6 = tpu.concatenate %1, %3, %5 in 1 : vector<16x128xf32>, vector<16x128xf32>, vector<16x128xf32> -> vector<16x384xf32>
    %c0_8 = arith.constant 0 : index
    %c0_9 = arith.constant 0 : index
    %7 = vector.load %arg7[%c0_8, %c0_9] : memref<16x16xf32, #tpu.memory_space<vmem>>, vector<16x16xf32>
    %8 = vector.extract_strided_slice %7 {offsets = [0, 0], sizes = [16, 1], strides = [1, 1]} : vector<16x16xf32> to vector<16x1xf32>
    %9 = vector.extract_strided_slice %7 {offsets = [0, 1], sizes = [16, 1], strides = [1, 1]} : vector<16x16xf32> to vector<16x1xf32>
    %10 = vector.extract_strided_slice %7 {offsets = [0, 2], sizes = [16, 1], strides = [1, 1]} : vector<16x16xf32> to vector<16x1xf32>
    %11 = vector.extract_strided_slice %7 {offsets = [0, 3], sizes = [16, 1], strides = [1, 1]} : vector<16x16xf32> to vector<16x1xf32>
    %12 = vector.extract_strided_slice %7 {offsets = [0, 4], sizes = [8, 1], strides = [1, 1]} : vector<16x16xf32> to vector<8x1xf32>
    %13 = vector.extract_strided_slice %7 {offsets = [0, 5], sizes = [16, 1], strides = [1, 1]} : vector<16x16xf32> to vector<16x1xf32>
    %14 = vector.extract_strided_slice %7 {offsets = [0, 6], sizes = [8, 1], strides = [1, 1]} : vector<16x16xf32> to vector<8x1xf32>
    %c0_10 = arith.constant 0 : index
    %c0_11 = arith.constant 0 : index
    %c0_12 = arith.constant 0 : index
    %15 = vector.load %arg5[%c0_10, %c0_11, %c0_12] : memref<1x1x384xf32, #tpu.memory_space<vmem>>, vector<1x1x384xf32>
    %16 = vector.shape_cast %15 : vector<1x1x384xf32> to vector<1x384xf32>
    %c0_13 = arith.constant 0 : index
    %c0_14 = arith.constant 0 : index
    %c0_15 = arith.constant 0 : index
    %17 = vector.load %arg6[%c0_13, %c0_14, %c0_15] : memref<3x1x384xf32, #tpu.memory_space<vmem>>, vector<3x1x384xf32>
    %cst = arith.constant dense<0.000000e+00> : vector<384xf32>
    %18 = vector.multi_reduction <add>, %6, %cst [0] : vector<16x384xf32> to vector<384xf32>
    %19 = vector.shape_cast %18 : vector<384xf32> to vector<1x384xf32>
    %cst_16 = arith.constant 1.600000e+01 : f32
    %20 = vector.broadcast %cst_16 : f32 to vector<1x384xf32>
    %21 = arith.divf %19, %20 : vector<1x384xf32>
    %22 = arith.mulf %6, %6 : vector<16x384xf32>
    %cst_17 = arith.constant dense<0.000000e+00> : vector<384xf32>
    %23 = vector.multi_reduction <add>, %22, %cst_17 [0] : vector<16x384xf32> to vector<384xf32>
    %24 = vector.shape_cast %23 : vector<384xf32> to vector<1x384xf32>
    %cst_18 = arith.constant 1.600000e+01 : f32
    %25 = vector.broadcast %cst_18 : f32 to vector<1x384xf32>
    %26 = arith.divf %24, %25 : vector<1x384xf32>
    %27 = arith.mulf %21, %21 : vector<1x384xf32>
    %28 = arith.subf %26, %27 : vector<1x384xf32>
    %29 = vector.broadcast %21 : vector<1x384xf32> to vector<16x384xf32>
    %30 = arith.subf %6, %29 : vector<16x384xf32>
    %cst_19 = arith.constant 9.99999974E-6 : f32
    %31 = vector.broadcast %cst_19 : f32 to vector<1x384xf32>
    %32 = arith.addf %28, %31 : vector<1x384xf32>
    %33 = math.rsqrt %32 : vector<1x384xf32>
    %34 = vector.broadcast %33 : vector<1x384xf32> to vector<16x384xf32>
    %35 = arith.mulf %30, %34 : vector<16x384xf32>
    %36 = vector.broadcast %8 : vector<16x1xf32> to vector<16x384xf32>
    %37 = arith.mulf %35, %36 : vector<16x384xf32>
    %c0_20 = arith.constant 0 : index
    %c0_21 = arith.constant 0 : index
    %c0_22 = arith.constant 0 : index
    %38 = vector.load %arg8[%c0_20, %c0_21, %c0_22] : memref<2x16x8xf32, #tpu.memory_space<vmem>>, vector<1x16x8xf32>
    %39 = vector.shape_cast %38 : vector<1x16x8xf32> to vector<16x8xf32>
    %c0_23 = arith.constant 0 : index
    %c0_24 = arith.constant 0 : index
    %c0_25 = arith.constant 0 : index
    %40 = vector.load %arg9[%c0_23, %c0_24, %c0_25] : memref<2x8x16xf32, #tpu.memory_space<vmem>>, vector<1x8x16xf32>
    %41 = vector.shape_cast %40 : vector<1x8x16xf32> to vector<8x16xf32>
    %42 = vector.extract_strided_slice %37 {offsets = [0, 0], sizes = [8, 384], strides = [1, 1]} : vector<16x384xf32> to vector<8x384xf32>
    %cst_26 = arith.constant dense<0.000000e+00> : vector<16x384xf32>
    %43 = tpu.matmul %39, %42, %cst_26 {dimension_numbers = #tpu.dot_dimension_numbers<[1], [0], [0], [1], [0, 0, 1, 1], [], []>} : vector<16x8xf32>, vector<8x384xf32>, vector<16x384xf32> -> vector<16x384xf32>
    %44 = vector.broadcast %11 : vector<16x1xf32> to vector<16x384xf32>
    %45 = arith.addf %43, %44 : vector<16x384xf32>
    %46 = arith.negf %45 : vector<16x384xf32>
    %47 = math.exp %46 : vector<16x384xf32>
    %cst_27 = arith.constant 1.000000e+00 : f32
    %48 = vector.broadcast %cst_27 : f32 to vector<16x384xf32>
    %49 = arith.addf %48, %47 : vector<16x384xf32>
    %50 = arith.divf %48, %49 : vector<16x384xf32>
    %51 = arith.mulf %45, %50 : vector<16x384xf32>
    %cst_28 = arith.constant dense<0.000000e+00> : vector<8x384xf32>
    %52 = tpu.matmul %41, %51, %cst_28 {dimension_numbers = #tpu.dot_dimension_numbers<[1], [0], [0], [1], [0, 0, 1, 1], [], []>} : vector<8x16xf32>, vector<16x384xf32>, vector<8x384xf32> -> vector<8x384xf32>
    %53 = vector.broadcast %12 : vector<8x1xf32> to vector<8x384xf32>
    %54 = arith.addf %52, %53 : vector<8x384xf32>
    %55 = vector.extract_strided_slice %54 {offsets = [0, 0], sizes = [1, 384], strides = [1, 1]} : vector<8x384xf32> to vector<1x384xf32>
    %56 = vector.extract_strided_slice %54 {offsets = [2, 0], sizes = [1, 384], strides = [1, 1]} : vector<8x384xf32> to vector<1x384xf32>
    %57 = vector.extract_strided_slice %54 {offsets = [4, 0], sizes = [1, 384], strides = [1, 1]} : vector<8x384xf32> to vector<1x384xf32>
    %58 = vector.extract_strided_slice %54 {offsets = [6, 0], sizes = [1, 384], strides = [1, 1]} : vector<8x384xf32> to vector<1x384xf32>
    %59 = vector.extract_strided_slice %37 {offsets = [8, 0], sizes = [1, 384], strides = [1, 1]} : vector<16x384xf32> to vector<1x384xf32>
    %60 = vector.extract_strided_slice %37 {offsets = [10, 0], sizes = [1, 384], strides = [1, 1]} : vector<16x384xf32> to vector<1x384xf32>
    %61 = vector.extract_strided_slice %37 {offsets = [12, 0], sizes = [1, 384], strides = [1, 1]} : vector<16x384xf32> to vector<1x384xf32>
    %62 = vector.extract_strided_slice %37 {offsets = [14, 0], sizes = [1, 384], strides = [1, 1]} : vector<16x384xf32> to vector<1x384xf32>
    %63 = vector.extract_strided_slice %54 {offsets = [1, 0], sizes = [1, 384], strides = [1, 1]} : vector<8x384xf32> to vector<1x384xf32>
    %64 = vector.extract_strided_slice %54 {offsets = [3, 0], sizes = [1, 384], strides = [1, 1]} : vector<8x384xf32> to vector<1x384xf32>
    %65 = vector.extract_strided_slice %54 {offsets = [5, 0], sizes = [1, 384], strides = [1, 1]} : vector<8x384xf32> to vector<1x384xf32>
    %66 = vector.extract_strided_slice %54 {offsets = [7, 0], sizes = [1, 384], strides = [1, 1]} : vector<8x384xf32> to vector<1x384xf32>
    %67 = vector.extract_strided_slice %37 {offsets = [9, 0], sizes = [1, 384], strides = [1, 1]} : vector<16x384xf32> to vector<1x384xf32>
    %68 = vector.extract_strided_slice %37 {offsets = [11, 0], sizes = [1, 384], strides = [1, 1]} : vector<16x384xf32> to vector<1x384xf32>
    %69 = vector.extract_strided_slice %37 {offsets = [13, 0], sizes = [1, 384], strides = [1, 1]} : vector<16x384xf32> to vector<1x384xf32>
    %70 = vector.extract_strided_slice %37 {offsets = [15, 0], sizes = [1, 384], strides = [1, 1]} : vector<16x384xf32> to vector<1x384xf32>
    %71 = tpu.concatenate %55, %56, %57, %58, %59, %60, %61, %62, %63, %64, %65, %66, %67, %68, %69, %70 in 0 : vector<1x384xf32>, vector<1x384xf32>, vector<1x384xf32>, vector<1x384xf32>, vector<1x384xf32>, vector<1x384xf32>, vector<1x384xf32>, vector<1x384xf32>, vector<1x384xf32>, vector<1x384xf32>, vector<1x384xf32>, vector<1x384xf32>, vector<1x384xf32>, vector<1x384xf32>, vector<1x384xf32>, vector<1x384xf32> -> vector<16x384xf32>
    %72 = arith.addf %71, %6 : vector<16x384xf32>
    %73 = vector.broadcast %16 : vector<1x384xf32> to vector<16x384xf32>
    %74 = arith.mulf %72, %73 : vector<16x384xf32>
    %75 = vector.shape_cast %10 : vector<16x1xf32> to vector<16x1xf32>
    %76 = vector.broadcast %75 : vector<16x1xf32> to vector<16x384xf32>
    %c17_i32 = arith.constant 17 : i32
    %77 = tpu.dynamic_rotate %74 by %c17_i32 dim 1 : vector<16x384xf32>, i32 -> vector<16x384xf32>
    %78 = vector.extract_strided_slice %7 {offsets = [0, 7], sizes = [16, 1], strides = [1, 1]} : vector<16x16xf32> to vector<16x1xf32>
    %79 = vector.broadcast %78 : vector<16x1xf32> to vector<16x384xf32>
    %80 = arith.mulf %77, %79 : vector<16x384xf32>
    %81 = vector.extract_strided_slice %17 {offsets = [0, 0, 0], sizes = [1, 1, 384], strides = [1, 1, 1]} : vector<3x1x384xf32> to vector<1x1x384xf32>
    %82 = vector.shape_cast %81 : vector<1x1x384xf32> to vector<1x384xf32>
    %83 = vector.broadcast %82 : vector<1x384xf32> to vector<16x384xf32>
    %84 = arith.mulf %80, %83 : vector<16x384xf32>
    %85 = arith.addf %76, %84 : vector<16x384xf32>
    %c16_i32 = arith.constant 16 : i32
    %86 = tpu.dynamic_rotate %74 by %c16_i32 dim 1 : vector<16x384xf32>, i32 -> vector<16x384xf32>
    %87 = vector.extract_strided_slice %7 {offsets = [0, 8], sizes = [16, 1], strides = [1, 1]} : vector<16x16xf32> to vector<16x1xf32>
    %88 = vector.broadcast %87 : vector<16x1xf32> to vector<16x384xf32>
    %89 = arith.mulf %86, %88 : vector<16x384xf32>
    %90 = arith.addf %85, %89 : vector<16x384xf32>
    %c15_i32 = arith.constant 15 : i32
    %91 = tpu.dynamic_rotate %74 by %c15_i32 dim 1 : vector<16x384xf32>, i32 -> vector<16x384xf32>
    %92 = vector.extract_strided_slice %7 {offsets = [0, 9], sizes = [16, 1], strides = [1, 1]} : vector<16x16xf32> to vector<16x1xf32>
    %93 = vector.broadcast %92 : vector<16x1xf32> to vector<16x384xf32>
    %94 = arith.mulf %91, %93 : vector<16x384xf32>
    %95 = vector.extract_strided_slice %17 {offsets = [2, 0, 0], sizes = [1, 1, 384], strides = [1, 1, 1]} : vector<3x1x384xf32> to vector<1x1x384xf32>
    %96 = vector.shape_cast %95 : vector<1x1x384xf32> to vector<1x384xf32>
    %97 = vector.broadcast %96 : vector<1x384xf32> to vector<16x384xf32>
    %98 = arith.mulf %94, %97 : vector<16x384xf32>
    %99 = arith.addf %90, %98 : vector<16x384xf32>
    %c1_i32 = arith.constant 1 : i32
    %100 = tpu.dynamic_rotate %74 by %c1_i32 dim 1 : vector<16x384xf32>, i32 -> vector<16x384xf32>
    %101 = vector.extract_strided_slice %7 {offsets = [0, 10], sizes = [16, 1], strides = [1, 1]} : vector<16x16xf32> to vector<16x1xf32>
    %102 = vector.broadcast %101 : vector<16x1xf32> to vector<16x384xf32>
    %103 = arith.mulf %100, %102 : vector<16x384xf32>
    %104 = vector.extract_strided_slice %17 {offsets = [0, 0, 0], sizes = [1, 1, 384], strides = [1, 1, 1]} : vector<3x1x384xf32> to vector<1x1x384xf32>
    %105 = vector.shape_cast %104 : vector<1x1x384xf32> to vector<1x384xf32>
    %106 = vector.broadcast %105 : vector<1x384xf32> to vector<16x384xf32>
    %107 = arith.mulf %103, %106 : vector<16x384xf32>
    %108 = arith.addf %99, %107 : vector<16x384xf32>
    %109 = vector.extract_strided_slice %7 {offsets = [0, 11], sizes = [16, 1], strides = [1, 1]} : vector<16x16xf32> to vector<16x1xf32>
    %110 = vector.broadcast %109 : vector<16x1xf32> to vector<16x384xf32>
    %111 = arith.mulf %74, %110 : vector<16x384xf32>
    %112 = arith.addf %108, %111 : vector<16x384xf32>
    %c383_i32 = arith.constant 383 : i32
    %113 = tpu.dynamic_rotate %74 by %c383_i32 dim 1 : vector<16x384xf32>, i32 -> vector<16x384xf32>
    %114 = vector.extract_strided_slice %7 {offsets = [0, 12], sizes = [16, 1], strides = [1, 1]} : vector<16x16xf32> to vector<16x1xf32>
    %115 = vector.broadcast %114 : vector<16x1xf32> to vector<16x384xf32>
    %116 = arith.mulf %113, %115 : vector<16x384xf32>
    %117 = vector.extract_strided_slice %17 {offsets = [2, 0, 0], sizes = [1, 1, 384], strides = [1, 1, 1]} : vector<3x1x384xf32> to vector<1x1x384xf32>
    %118 = vector.shape_cast %117 : vector<1x1x384xf32> to vector<1x384xf32>
    %119 = vector.broadcast %118 : vector<1x384xf32> to vector<16x384xf32>
    %120 = arith.mulf %116, %119 : vector<16x384xf32>
    %121 = arith.addf %112, %120 : vector<16x384xf32>
    %c369_i32 = arith.constant 369 : i32
    %122 = tpu.dynamic_rotate %74 by %c369_i32 dim 1 : vector<16x384xf32>, i32 -> vector<16x384xf32>
    %123 = vector.extract_strided_slice %7 {offsets = [0, 13], sizes = [16, 1], strides = [1, 1]} : vector<16x16xf32> to vector<16x1xf32>
    %124 = vector.broadcast %123 : vector<16x1xf32> to vector<16x384xf32>
    %125 = arith.mulf %122, %124 : vector<16x384xf32>
    %126 = vector.extract_strided_slice %17 {offsets = [0, 0, 0], sizes = [1, 1, 384], strides = [1, 1, 1]} : vector<3x1x384xf32> to vector<1x1x384xf32>
    %127 = vector.shape_cast %126 : vector<1x1x384xf32> to vector<1x384xf32>
    %128 = vector.broadcast %127 : vector<1x384xf32> to vector<16x384xf32>
    %129 = arith.mulf %125, %128 : vector<16x384xf32>
    %130 = arith.addf %121, %129 : vector<16x384xf32>
    %c368_i32 = arith.constant 368 : i32
    %131 = tpu.dynamic_rotate %74 by %c368_i32 dim 1 : vector<16x384xf32>, i32 -> vector<16x384xf32>
    %132 = vector.extract_strided_slice %7 {offsets = [0, 14], sizes = [16, 1], strides = [1, 1]} : vector<16x16xf32> to vector<16x1xf32>
    %133 = vector.broadcast %132 : vector<16x1xf32> to vector<16x384xf32>
    %134 = arith.mulf %131, %133 : vector<16x384xf32>
    %135 = arith.addf %130, %134 : vector<16x384xf32>
    %c367_i32 = arith.constant 367 : i32
    %136 = tpu.dynamic_rotate %74 by %c367_i32 dim 1 : vector<16x384xf32>, i32 -> vector<16x384xf32>
    %137 = vector.extract_strided_slice %7 {offsets = [0, 15], sizes = [16, 1], strides = [1, 1]} : vector<16x16xf32> to vector<16x1xf32>
    %138 = vector.broadcast %137 : vector<16x1xf32> to vector<16x384xf32>
    %139 = arith.mulf %136, %138 : vector<16x384xf32>
    %140 = vector.extract_strided_slice %17 {offsets = [2, 0, 0], sizes = [1, 1, 384], strides = [1, 1, 1]} : vector<3x1x384xf32> to vector<1x1x384xf32>
    %141 = vector.shape_cast %140 : vector<1x1x384xf32> to vector<1x384xf32>
    %142 = vector.broadcast %141 : vector<1x384xf32> to vector<16x384xf32>
    %143 = arith.mulf %139, %142 : vector<16x384xf32>
    %144 = arith.addf %135, %143 : vector<16x384xf32>
    %145 = vector.extract_strided_slice %144 {offsets = [0, 128], sizes = [16, 128], strides = [1, 1]} : vector<16x384xf32> to vector<16x128xf32>
    %cst_29 = arith.constant dense<0.000000e+00> : vector<128xf32>
    %146 = vector.multi_reduction <add>, %145, %cst_29 [0] : vector<16x128xf32> to vector<128xf32>
    %147 = vector.shape_cast %146 : vector<128xf32> to vector<1x128xf32>
    %cst_30 = arith.constant 1.600000e+01 : f32
    %148 = vector.broadcast %cst_30 : f32 to vector<1x128xf32>
    %149 = arith.divf %147, %148 : vector<1x128xf32>
    %150 = arith.mulf %145, %145 : vector<16x128xf32>
    %cst_31 = arith.constant dense<0.000000e+00> : vector<128xf32>
    %151 = vector.multi_reduction <add>, %150, %cst_31 [0] : vector<16x128xf32> to vector<128xf32>
    %152 = vector.shape_cast %151 : vector<128xf32> to vector<1x128xf32>
    %cst_32 = arith.constant 1.600000e+01 : f32
    %153 = vector.broadcast %cst_32 : f32 to vector<1x128xf32>
    %154 = arith.divf %152, %153 : vector<1x128xf32>
    %155 = arith.mulf %149, %149 : vector<1x128xf32>
    %156 = arith.subf %154, %155 : vector<1x128xf32>
    %157 = vector.broadcast %149 : vector<1x128xf32> to vector<16x128xf32>
    %158 = arith.subf %145, %157 : vector<16x128xf32>
    %cst_33 = arith.constant 9.99999974E-6 : f32
    %159 = vector.broadcast %cst_33 : f32 to vector<1x128xf32>
    %160 = arith.addf %156, %159 : vector<1x128xf32>
    %161 = math.rsqrt %160 : vector<1x128xf32>
    %162 = vector.broadcast %161 : vector<1x128xf32> to vector<16x128xf32>
    %163 = arith.mulf %158, %162 : vector<16x128xf32>
    %164 = vector.broadcast %9 : vector<16x1xf32> to vector<16x128xf32>
    %165 = arith.mulf %163, %164 : vector<16x128xf32>
    %c1 = arith.constant 1 : index
    %c0_34 = arith.constant 0 : index
    %c0_35 = arith.constant 0 : index
    %166 = vector.load %arg8[%c1, %c0_34, %c0_35] : memref<2x16x8xf32, #tpu.memory_space<vmem>>, vector<1x16x8xf32>
    %167 = vector.shape_cast %166 : vector<1x16x8xf32> to vector<16x8xf32>
    %c1_36 = arith.constant 1 : index
    %c0_37 = arith.constant 0 : index
    %c0_38 = arith.constant 0 : index
    %168 = vector.load %arg9[%c1_36, %c0_37, %c0_38] : memref<2x8x16xf32, #tpu.memory_space<vmem>>, vector<1x8x16xf32>
    %169 = vector.shape_cast %168 : vector<1x8x16xf32> to vector<8x16xf32>
    %170 = vector.extract_strided_slice %165 {offsets = [0, 0], sizes = [8, 128], strides = [1, 1]} : vector<16x128xf32> to vector<8x128xf32>
    %cst_39 = arith.constant dense<0.000000e+00> : vector<16x128xf32>
    %171 = tpu.matmul %167, %170, %cst_39 {dimension_numbers = #tpu.dot_dimension_numbers<[1], [0], [0], [1], [0, 0, 1, 1], [], []>} : vector<16x8xf32>, vector<8x128xf32>, vector<16x128xf32> -> vector<16x128xf32>
    %172 = vector.broadcast %13 : vector<16x1xf32> to vector<16x128xf32>
    %173 = arith.addf %171, %172 : vector<16x128xf32>
    %174 = arith.negf %173 : vector<16x128xf32>
    %175 = math.exp %174 : vector<16x128xf32>
    %cst_40 = arith.constant 1.000000e+00 : f32
    %176 = vector.broadcast %cst_40 : f32 to vector<16x128xf32>
    %177 = arith.addf %176, %175 : vector<16x128xf32>
    %178 = arith.divf %176, %177 : vector<16x128xf32>
    %179 = arith.mulf %173, %178 : vector<16x128xf32>
    %cst_41 = arith.constant dense<0.000000e+00> : vector<8x128xf32>
    %180 = tpu.matmul %169, %179, %cst_41 {dimension_numbers = #tpu.dot_dimension_numbers<[1], [0], [0], [1], [0, 0, 1, 1], [], []>} : vector<8x16xf32>, vector<16x128xf32>, vector<8x128xf32> -> vector<8x128xf32>
    %181 = vector.broadcast %14 : vector<8x1xf32> to vector<8x128xf32>
    %182 = arith.addf %180, %181 : vector<8x128xf32>
    %183 = vector.extract_strided_slice %182 {offsets = [0, 0], sizes = [1, 128], strides = [1, 1]} : vector<8x128xf32> to vector<1x128xf32>
    %184 = vector.extract_strided_slice %182 {offsets = [2, 0], sizes = [1, 128], strides = [1, 1]} : vector<8x128xf32> to vector<1x128xf32>
    %185 = vector.extract_strided_slice %182 {offsets = [4, 0], sizes = [1, 128], strides = [1, 1]} : vector<8x128xf32> to vector<1x128xf32>
    %186 = vector.extract_strided_slice %182 {offsets = [6, 0], sizes = [1, 128], strides = [1, 1]} : vector<8x128xf32> to vector<1x128xf32>
    %187 = vector.extract_strided_slice %165 {offsets = [8, 0], sizes = [1, 128], strides = [1, 1]} : vector<16x128xf32> to vector<1x128xf32>
    %188 = vector.extract_strided_slice %165 {offsets = [10, 0], sizes = [1, 128], strides = [1, 1]} : vector<16x128xf32> to vector<1x128xf32>
    %189 = vector.extract_strided_slice %165 {offsets = [12, 0], sizes = [1, 128], strides = [1, 1]} : vector<16x128xf32> to vector<1x128xf32>
    %190 = vector.extract_strided_slice %165 {offsets = [14, 0], sizes = [1, 128], strides = [1, 1]} : vector<16x128xf32> to vector<1x128xf32>
    %191 = vector.extract_strided_slice %182 {offsets = [1, 0], sizes = [1, 128], strides = [1, 1]} : vector<8x128xf32> to vector<1x128xf32>
    %192 = vector.extract_strided_slice %182 {offsets = [3, 0], sizes = [1, 128], strides = [1, 1]} : vector<8x128xf32> to vector<1x128xf32>
    %193 = vector.extract_strided_slice %182 {offsets = [5, 0], sizes = [1, 128], strides = [1, 1]} : vector<8x128xf32> to vector<1x128xf32>
    %194 = vector.extract_strided_slice %182 {offsets = [7, 0], sizes = [1, 128], strides = [1, 1]} : vector<8x128xf32> to vector<1x128xf32>
    %195 = vector.extract_strided_slice %165 {offsets = [9, 0], sizes = [1, 128], strides = [1, 1]} : vector<16x128xf32> to vector<1x128xf32>
    %196 = vector.extract_strided_slice %165 {offsets = [11, 0], sizes = [1, 128], strides = [1, 1]} : vector<16x128xf32> to vector<1x128xf32>
    %197 = vector.extract_strided_slice %165 {offsets = [13, 0], sizes = [1, 128], strides = [1, 1]} : vector<16x128xf32> to vector<1x128xf32>
    %198 = vector.extract_strided_slice %165 {offsets = [15, 0], sizes = [1, 128], strides = [1, 1]} : vector<16x128xf32> to vector<1x128xf32>
    %199 = tpu.concatenate %183, %184, %185, %186, %187, %188, %189, %190, %191, %192, %193, %194, %195, %196, %197, %198 in 0 : vector<1x128xf32>, vector<1x128xf32>, vector<1x128xf32>, vector<1x128xf32>, vector<1x128xf32>, vector<1x128xf32>, vector<1x128xf32>, vector<1x128xf32>, vector<1x128xf32>, vector<1x128xf32>, vector<1x128xf32>, vector<1x128xf32>, vector<1x128xf32>, vector<1x128xf32>, vector<1x128xf32>, vector<1x128xf32> -> vector<16x128xf32>
    %200 = arith.addf %199, %145 : vector<16x128xf32>
    %c0_42 = arith.constant 0 : index
    %c0_43 = arith.constant 0 : index
    %c0_44 = arith.constant 0 : index
    %201 = vector.load %arg10[%c0_42, %c0_43, %c0_44] : memref<1x16x128xf32, #tpu.memory_space<vmem>>, vector<1x16x128xf32>
    %202 = vector.shape_cast %201 : vector<1x16x128xf32> to vector<16x128xf32>
    %203 = vector.shape_cast %200 : vector<16x128xf32> to vector<1x16x128xf32>
    tpu.vector_store %arg10[%c0_42, %c0_43, %c0_44], %203 {strides = array<i32>} : memref<1x16x128xf32, #tpu.memory_space<vmem>>, vector<1x16x128xf32>,
    return
  }
  func.func @transform_0(%arg0: i32, %arg1: i32) -> (i32, i32, i32) {
    %c1_i32 = arith.constant 1 : i32
    %0 = arith.muli %arg1, %c1_i32 : i32
    %c1_i32_0 = arith.constant 1 : i32
    %1 = arith.subi %0, %c1_i32_0 : i32
    %c0_i32 = arith.constant 0 : i32
    %2 = arith.maxsi %1, %c0_i32 : i32
    %c0_i32_1 = arith.constant 0 : i32
    %c0_i32_2 = arith.constant 0 : i32
    return %arg0, %c0_i32_1, %2 : i32, i32, i32
  }
  func.func @transform_1(%arg0: i32, %arg1: i32) -> (i32, i32, i32) {
    %c0_i32 = arith.constant 0 : i32
    %c0_i32_0 = arith.constant 0 : i32
    return %arg0, %c0_i32, %arg1 : i32, i32, i32
  }
  func.func @transform_2(%arg0: i32, %arg1: i32) -> (i32, i32, i32) {
    %c1_i32 = arith.constant 1 : i32
    %0 = arith.addi %arg1, %c1_i32 : i32
    %c1_i32_0 = arith.constant 1 : i32
    %1 = arith.muli %0, %c1_i32_0 : i32
    %c3_i32 = arith.constant 3 : i32
    %2 = arith.minsi %1, %c3_i32 : i32
    %c0_i32 = arith.constant 0 : i32
    %c0_i32_1 = arith.constant 0 : i32
    return %arg0, %c0_i32, %2 : i32, i32, i32
  }
  func.func @transform_3(%arg0: i32, %arg1: i32) -> (i32, i32, i32) {
    %c0_i32 = arith.constant 0 : i32
    %c0_i32_0 = arith.constant 0 : i32
    %c0_i32_1 = arith.constant 0 : i32
    return %arg1, %c0_i32, %c0_i32_0 : i32, i32, i32
  }
  func.func @transform_4(%arg0: i32, %arg1: i32) -> (i32, i32, i32) {
    %c0_i32 = arith.constant 0 : i32
    %c0_i32_0 = arith.constant 0 : i32
    %c0_i32_1 = arith.constant 0 : i32
    %c0_i32_2 = arith.constant 0 : i32
    return %c0_i32, %c0_i32_0, %c0_i32_1 : i32, i32, i32
  }
  func.func @transform_5(%arg0: i32, %arg1: i32) -> (i32, i32) {
    %c0_i32 = arith.constant 0 : i32
    %c0_i32_0 = arith.constant 0 : i32
    %c0_i32_1 = arith.constant 0 : i32
    return %c0_i32, %c0_i32_0 : i32, i32
  }
  func.func @transform_6(%arg0: i32, %arg1: i32) -> (i32, i32, i32) {
    %c0_i32 = arith.constant 0 : i32
    %c0_i32_0 = arith.constant 0 : i32
    %c0_i32_1 = arith.constant 0 : i32
    %c0_i32_2 = arith.constant 0 : i32
    return %c0_i32, %c0_i32_0, %c0_i32_1 : i32, i32, i32
  }
  func.func @transform_7(%arg0: i32, %arg1: i32) -> (i32, i32, i32) {
    %c0_i32 = arith.constant 0 : i32
    %c0_i32_0 = arith.constant 0 : i32
    %c0_i32_1 = arith.constant 0 : i32
    %c0_i32_2 = arith.constant 0 : i32
    return %c0_i32, %c0_i32_0, %c0_i32_1 : i32, i32, i32
  }
  func.func @transform_8(%arg0: i32, %arg1: i32) -> (i32, i32, i32) {
    %c0_i32 = arith.constant 0 : i32
    %c0_i32_0 = arith.constant 0 : i32
    return %arg0, %c0_i32, %arg1 : i32, i32, i32
  }
}

</mosaic_0001>

<llo_original>
// kernel: tpu_custom_call.1
$region0: #{tpu_custom_call.1}
  #allocation0 [shape = 'u32[]', space=smem, size = 0x4, offset = 0x4, fixed_abs, tag = 'smem constant byte address 0x4 - core index']
  #allocation1 [shape = 'u32[144,128]{1,0:T(1,128)}', space=vmem, size = 0x12000, scoped, tag = 'internal scratch']
  %s0 = inlined_call_operand.hbm [shape: f32[2,16,512], index: 0, kind: input, shape index: {}]
  %s1 = inlined_call_operand.hbm [shape: f32[2,16,512], index: 1, kind: input, shape index: {}]
  %s2 = inlined_call_operand.hbm [shape: f32[2,16,512], index: 2, kind: input, shape index: {}]
  %s3 = inlined_call_operand.vmem [shape: f32[4,1,384], index: 3, kind: input, shape index: {}]
  %s4 = inlined_call_operand.vmem [shape: f32[3,1,384], index: 4, kind: input, shape index: {}]
  %s5 = inlined_call_operand.vmem [shape: f32[16,16], index: 5, kind: input, shape index: {}]
  %s6 = inlined_call_operand.vmem [shape: f32[2,16,8], index: 6, kind: input, shape index: {}]
  %s7 = inlined_call_operand.vmem [shape: f32[2,8,16], index: 7, kind: input, shape index: {}]
  %s8 = inlined_call_operand.hbm [shape: f32[2,16,512], index: 8, kind: output, shape index: {}]
  %s9 = sld [smem:[#allocation0]]
  $region77: #{tpu_custom_call.1} parent=0
    _
  %s11 = ssub.s32 1, %s9
  %s12 = scalar_select 0, %s11, %s9
  $region1: #{tpu_custom_call.1} parent=0
    #allocation2 [shape = 'u8[16384]{0}', space=vmem, size = 0x4000, scoped, tag = 'input window, operand 0']
    #allocation3 [shape = 's32[2]{0}', space=sflag, size = 0x8, scoped, tag = 'scoped memory for tpu_custom_call.1']
    #allocation4 [shape = 's32[2]{0}', space=sflag, size = 0x8, scoped, tag = 'scoped memory for tpu_custom_call.1']
    #allocation5 [shape = 'u8[16384]{0}', space=vmem, size = 0x4000, scoped, tag = 'input window, operand 1']
    #allocation6 [shape = 's32[2]{0}', space=sflag, size = 0x8, scoped, tag = 'scoped memory for tpu_custom_call.1']
    #allocation7 [shape = 'u8[16384]{0}', space=vmem, size = 0x4000, scoped, tag = 'input window, operand 2']
    #allocation8 [shape = 'u8[16384]{0}', space=vmem, size = 0x4000, scoped, tag = 'output window, operand 0']
    %13 = vsyncpa [#allocation3], 0
    %s14 = scalar_lea.sflag [#allocation3], 1
    %15 = vsyncpa %s14, 0
    %16 = vsyncpa [#allocation6], 0
    %s17 = scalar_lea.sflag [#allocation6], 1
    %18 = vsyncpa %s17, 0
    %19 = vsyncpa [#allocation4], 0
    %s20 = scalar_lea.sflag [#allocation4], 1
    %21 = vsyncpa %s20, 0
    loop: start=0, step=1, limit=10
    $region2: #{tpu_custom_call.1} parent=1 // loop_pre_header
      _
    $region3: #{tpu_custom_call.1} parent=1 // loop_header
      %s23 = sphi 0, %s27
      %p24 = scmp.ge.s32.totalorder %s23, 10
      %s30 = sphi 0, %s42
      %s31 = sphi 0, %s38
      %s32 = sphi 0, %s30
      %s33 = sphi 0, %s31
      %s34 = sphi 0, %s32
      %s35 = sphi 0, %s33
      %s53 = sphi 0, %s55
      %s56 = sphi 0, %s53
      %s57 = sphi 0, %s56
      %s73 = sphi 0, %s57
      %s81 = sphi 0, %s83
      %s84 = sphi 0, %s81
      %s85 = sphi 0, %s84
      %s101 = sphi 0, %s85
      %s115 = sphi 0, %s117
      %s118 = sphi 0, %s115
      %s119 = sphi 0, %s118
      %s135 = sphi 0, %s119
      %s141 = sphi 0, %s143
      %s144 = sphi 0, %s141
      %s145 = sphi 0, %s144
      %s161 = sphi 0, %s145
      %s165 = sphi 0, %s165
      %s167 = sphi 0, %s165
      %s168 = sphi 0, %s167
      %s182 = sphi 0, %s168
      %s186 = sphi 0, %s186
      %s188 = sphi 0, %s186
      %s189 = sphi 0, %s188
      %s203 = sphi 0, %s189
      %s207 = sphi 0, %s207
      %s209 = sphi 0, %s207
      %s210 = sphi 0, %s209
      %s224 = sphi 0, %s210
      %s228 = sphi 0, %s228
      %s230 = sphi 0, %s228
      %s231 = sphi 0, %s230
      %s245 = sphi 0, %s231
      %s253 = sphi 0, %s255
      %s256 = sphi 0, %s253
      %s257 = sphi 0, %s256
      %s273 = sphi 0, %s257
    $region4: #{tpu_custom_call.1} parent=1 // loop_header_branch
      %26 = sbr.rel (%p24) target = $region8
    $region5: #{tpu_custom_call.1} parent=1 // loop_body
      %s28 = ssub.s32 %s23, 1
      %s29 = ssub.s32 %s23, 2
      %s36 = sadd.s32 1, %s31
      %p37 = scmp.ge.s32.totalorder %s36, 4
      %s38 = scalar_select %p37, 0, %s36
      %s39 = sadd.s32 1, %s30
      %s40 = scalar_select %p37, %s39, %s30
      %p41 = scmp.ge.s32.totalorder %s40, 2
      %s42 = scalar_select %p41, 0, %s40
      %s43 = ssub.s32 %s31, 1
      %p44 = scmp.gt.s32.totalorder %s43, 0
      %s45 = scalar_select %p44, %s43, 0
      %s46 = ssub.s32 %s38, 1
      %p47 = scmp.gt.s32.totalorder %s46, 0
      %s48 = scalar_select %p47, %s46, 0
      %s49 = ssub.s32 %s30, %s42
      %s50 = ssub.s32 %s45, %s48
      %s51 = sor.u32 %s49, %s50
      %p52 = scmp.eq.s32.totalorder %s51, 0
      %s54 = sadd.s32 %s53, 1
      %s55 = scalar_select %p52, %s53, %s54
      %p58 = pneg %p52
      %p59 = scmp.eq.s32.totalorder %s23, 7
      %p60 = por %p58, %p59
      %p61 = scmp.ne.s32.totalorder %s53, %s56
      %p62 = scmp.eq.s32.totalorder %s23, 0
      %p63 = por %p61, %p62
      %p64 = scmp.ne.s32.totalorder %s53, %s56
      %p65 = scmp.eq.s32.totalorder %s28, 7
      %p66 = por %p64, %p65
      %p67 = scmp.ne.s32.totalorder %s56, %s57
      %p68 = scmp.eq.s32.totalorder %s28, 0
      %p69 = por %p67, %p68
      %p70 = scmp.ne.s32.totalorder %s56, %s57
      %p71 = scmp.eq.s32.totalorder %s29, 7
      %p72 = por %p70, %p71
      %p74 = scmp.ne.s32.totalorder %s57, %s73
      %p75 = scmp.eq.s32.totalorder %s29, 0
      %p76 = por %p74, %p75
      %s77 = ssub.s32 %s30, %s42
      %s78 = ssub.s32 %s31, %s38
      %s79 = sor.u32 %s77, %s78
      %p80 = scmp.eq.s32.totalorder %s79, 0
      %s82 = sadd.s32 %s81, 1
      %s83 = scalar_select %p80, %s81, %s82
      %p86 = pneg %p80
      %p87 = scmp.eq.s32.totalorder %s23, 7
      %p88 = por %p86, %p87
      %p89 = scmp.ne.s32.totalorder %s81, %s84
      %p90 = scmp.eq.s32.totalorder %s23, 0
      %p91 = por %p89, %p90
      %p92 = scmp.ne.s32.totalorder %s81, %s84
      %p93 = scmp.eq.s32.totalorder %s28, 7
      %p94 = por %p92, %p93
      %p95 = scmp.ne.s32.totalorder %s84, %s85
      %p96 = scmp.eq.s32.totalorder %s28, 0
      %p97 = por %p95, %p96
      %p98 = scmp.ne.s32.totalorder %s84, %s85
      %p99 = scmp.eq.s32.totalorder %s29, 7
      %p100 = por %p98, %p99
      %p102 = scmp.ne.s32.totalorder %s85, %s101
      %p103 = scmp.eq.s32.totalorder %s29, 0
      %p104 = por %p102, %p103
      %s105 = sadd.s32 %s31, 1
      %p106 = scmp.lt.s32.totalorder %s105, 3
      %s107 = scalar_select %p106, %s105, 3
      %s108 = sadd.s32 %s38, 1
      %p109 = scmp.lt.s32.totalorder %s108, 3
      %s110 = scalar_select %p109, %s108, 3
      %s111 = ssub.s32 %s30, %s42
      %s112 = ssub.s32 %s107, %s110
      %s113 = sor.u32 %s111, %s112
      %p114 = scmp.eq.s32.totalorder %s113, 0
      %s116 = sadd.s32 %s115, 1
      %s117 = scalar_select %p114, %s115, %s116
      %p120 = pneg %p114
      %p121 = scmp.eq.s32.totalorder %s23, 7
      %p122 = por %p120, %p121
      %p123 = scmp.ne.s32.totalorder %s115, %s118
      %p124 = scmp.eq.s32.totalorder %s23, 0
      %p125 = por %p123, %p124
      %p126 = scmp.ne.s32.totalorder %s115, %s118
      %p127 = scmp.eq.s32.totalorder %s28, 7
      %p128 = por %p126, %p127
      %p129 = scmp.ne.s32.totalorder %s118, %s119
      %p130 = scmp.eq.s32.totalorder %s28, 0
      %p131 = por %p129, %p130
      %p132 = scmp.ne.s32.totalorder %s118, %s119
      %p133 = scmp.eq.s32.totalorder %s29, 7
      %p134 = por %p132, %p133
      %p136 = scmp.ne.s32.totalorder %s119, %s135
      %p137 = scmp.eq.s32.totalorder %s29, 0
      %p138 = por %p136, %p137
      %s139 = ssub.s32 %s31, %s38
      %p140 = scmp.eq.s32.totalorder %s139, 0
      %s142 = sadd.s32 %s141, 1
      %s143 = scalar_select %p140, %s141, %s142
      %p146 = pneg %p140
      %p147 = scmp.eq.s32.totalorder %s23, 7
      %p148 = por %p146, %p147
      %p149 = scmp.ne.s32.totalorder %s141, %s144
      %p150 = scmp.eq.s32.totalorder %s23, 0
      %p151 = por %p149, %p150
      %p152 = scmp.ne.s32.totalorder %s141, %s144
      %p153 = scmp.eq.s32.totalorder %s28, 7
      %p154 = por %p152, %p153
      %p155 = scmp.ne.s32.totalorder %s144, %s145
      %p156 = scmp.eq.s32.totalorder %s28, 0
      %p157 = por %p155, %p156
      %p158 = scmp.ne.s32.totalorder %s144, %s145
      %p159 = scmp.eq.s32.totalorder %s29, 7
      %p160 = por %p158, %p159
      %p162 = scmp.ne.s32.totalorder %s145, %s161
      %p163 = scmp.eq.s32.totalorder %s29, 0
      %p164 = por %p162, %p163
      %s166 = sadd.s32 %s165, 1
      %p169 = scmp.eq.s32.totalorder %s23, 7
      %p170 = scmp.ne.s32.totalorder %s165, %s167
      %p171 = scmp.eq.s32.totalorder %s23, 0
      %p172 = por %p170, %p171
      %p173 = scmp.ne.s32.totalorder %s165, %s167
      %p174 = scmp.eq.s32.totalorder %s28, 7
      %p175 = por %p173, %p174
      %p176 = scmp.ne.s32.totalorder %s167, %s168
      %p177 = scmp.eq.s32.totalorder %s28, 0
      %p178 = por %p176, %p177
      %p179 = scmp.ne.s32.totalorder %s167, %s168
      %p180 = scmp.eq.s32.totalorder %s29, 7
      %p181 = por %p179, %p180
      %p183 = scmp.ne.s32.totalorder %s168, %s182
      %p184 = scmp.eq.s32.totalorder %s29, 0
      %p185 = por %p183, %p184
      %s187 = sadd.s32 %s186, 1
      %p190 = scmp.eq.s32.totalorder %s23, 7
      %p191 = scmp.ne.s32.totalorder %s186, %s188
      %p192 = scmp.eq.s32.totalorder %s23, 0
      %p193 = por %p191, %p192
      %p194 = scmp.ne.s32.totalorder %s186, %s188
      %p195 = scmp.eq.s32.totalorder %s28, 7
      %p196 = por %p194, %p195
      %p197 = scmp.ne.s32.totalorder %s188, %s189
      %p198 = scmp.eq.s32.totalorder %s28, 0
      %p199 = por %p197, %p198
      %p200 = scmp.ne.s32.totalorder %s188, %s189
      %p201 = scmp.eq.s32.totalorder %s29, 7
      %p202 = por %p200, %p201
      %p204 = scmp.ne.s32.totalorder %s189, %s203
      %p205 = scmp.eq.s32.totalorder %s29, 0
      %p206 = por %p204, %p205
      %s208 = sadd.s32 %s207, 1
      %p211 = scmp.eq.s32.totalorder %s23, 7
      %p212 = scmp.ne.s32.totalorder %s207, %s209
      %p213 = scmp.eq.s32.totalorder %s23, 0
      %p214 = por %p212, %p213
      %p215 = scmp.ne.s32.totalorder %s207, %s209
      %p216 = scmp.eq.s32.totalorder %s28, 7
      %p217 = por %p215, %p216
      %p218 = scmp.ne.s32.totalorder %s209, %s210
      %p219 = scmp.eq.s32.totalorder %s28, 0
      %p220 = por %p218, %p219
      %p221 = scmp.ne.s32.totalorder %s209, %s210
      %p222 = scmp.eq.s32.totalorder %s29, 7
      %p223 = por %p221, %p222
      %p225 = scmp.ne.s32.totalorder %s210, %s224
      %p226 = scmp.eq.s32.totalorder %s29, 0
      %p227 = por %p225, %p226
      %s229 = sadd.s32 %s228, 1
      %p232 = scmp.eq.s32.totalorder %s23, 7
      %p233 = scmp.ne.s32.totalorder %s228, %s230
      %p234 = scmp.eq.s32.totalorder %s23, 0
      %p235 = por %p233, %p234
      %p236 = scmp.ne.s32.totalorder %s228, %s230
      %p237 = scmp.eq.s32.totalorder %s28, 7
      %p238 = por %p236, %p237
      %p239 = scmp.ne.s32.totalorder %s230, %s231
      %p240 = scmp.eq.s32.totalorder %s28, 0
      %p241 = por %p239, %p240
      %p242 = scmp.ne.s32.totalorder %s230, %s231
      %p243 = scmp.eq.s32.totalorder %s29, 7
      %p244 = por %p242, %p243
      %p246 = scmp.ne.s32.totalorder %s231, %s245
      %p247 = scmp.eq.s32.totalorder %s29, 0
      %p248 = por %p246, %p247
      %s249 = ssub.s32 %s30, %s42
      %s250 = ssub.s32 %s31, %s38
      %s251 = sor.u32 %s249, %s250
      %p252 = scmp.eq.s32.totalorder %s251, 0
      %s254 = sadd.s32 %s253, 1
      %s255 = scalar_select %p252, %s253, %s254
      %p258 = pneg %p252
      %p259 = scmp.eq.s32.totalorder %s23, 7
      %p260 = por %p258, %p259
      %p261 = scmp.ne.s32.totalorder %s253, %s256
      %p262 = scmp.eq.s32.totalorder %s23, 0
      %p263 = por %p261, %p262
      %p264 = scmp.ne.s32.totalorder %s253, %s256
      %p265 = scmp.eq.s32.totalorder %s28, 7
      %p266 = por %p264, %p265
      %p267 = scmp.ne.s32.totalorder %s256, %s257
      %p268 = scmp.eq.s32.totalorder %s28, 0
      %p269 = por %p267, %p268
      %p270 = scmp.ne.s32.totalorder %s256, %s257
      %p271 = scmp.eq.s32.totalorder %s29, 7
      %p272 = por %p270, %p271
      %p274 = scmp.ne.s32.totalorder %s257, %s273
      %p275 = scmp.eq.s32.totalorder %s29, 0
      %p276 = por %p274, %p275
      %p277 = scmp.le.s32.totalorder 1, %s23
      %p278 = scmp.lt.s32.totalorder %s23, 9
      %p279 = pnand %p277, %p278
      %p280 = pneg %p279
      // Predicated region
      $region9: #{tpu_custom_call.1} parent=5 // pred_check
        _
      $region10: #{tpu_custom_call.1} parent=5 // pred_check_branch
        %282 = sbr.rel (%p279) target = $region12
      $region11: #{tpu_custom_call.1} parent=5 // pred_region
        %s283 = ssub.s32 %s23, 1
        // Predicated region
        $region13: #{tpu_custom_call.1} parent=11 // pred_check
          %p284 = pneg %p178
        $region14: #{tpu_custom_call.1} parent=11 // pred_check_branch
          %286 = sbr.rel (%p284) target = $region16
        $region15: #{tpu_custom_call.1} parent=11 // pred_region
          _
        $region16: #{tpu_custom_call.1} parent=11 // pred_fallthru
          _
        // Predicated region
        $region17: #{tpu_custom_call.1} parent=11 // pred_check
          %p287 = pneg %p199
        $region18: #{tpu_custom_call.1} parent=11 // pred_check_branch
          %289 = sbr.rel (%p287) target = $region20
        $region19: #{tpu_custom_call.1} parent=11 // pred_region
          _
        $region20: #{tpu_custom_call.1} parent=11 // pred_fallthru
          _
        // Predicated region
        $region21: #{tpu_custom_call.1} parent=11 // pred_check
          %p290 = pneg %p220
        $region22: #{tpu_custom_call.1} parent=11 // pred_check_branch
          %292 = sbr.rel (%p290) target = $region24
        $region23: #{tpu_custom_call.1} parent=11 // pred_region
          _
        $region24: #{tpu_custom_call.1} parent=11 // pred_fallthru
          _
        // Predicated region
        $region25: #{tpu_custom_call.1} parent=11 // pred_check
          %p293 = pneg %p241
        $region26: #{tpu_custom_call.1} parent=11 // pred_check_branch
          %295 = sbr.rel (%p293) target = $region28
        $region27: #{tpu_custom_call.1} parent=11 // pred_region
          _
        $region28: #{tpu_custom_call.1} parent=11 // pred_fallthru
          _
      $region12: #{tpu_custom_call.1} parent=5 // pred_fallthru
        _
      %p296 = scmp.lt.s32.totalorder %s23, 8
      // Predicated region
      $region29: #{tpu_custom_call.1} parent=5 // pred_check
        %p297 = pneg %p296
      $region30: #{tpu_custom_call.1} parent=5 // pred_check_branch
        %299 = sbr.rel (%p297) target = $region32
      $region31: #{tpu_custom_call.1} parent=5 // pred_region
        // Predicated region
        $region33: #{tpu_custom_call.1} parent=31 // pred_check
          %p300 = pneg %p63
        $region34: #{tpu_custom_call.1} parent=31 // pred_check_branch
          %302 = sbr.rel (%p300) target = $region36
        $region35: #{tpu_custom_call.1} parent=31 // pred_region
          %s303 = sand.u32 %s53, 1
          %s304 = scalar_lea.sflag [#allocation3], %s303
          %s305 = sand.u32 %s53, 1
          %s306 = smul.addr %s305, 16
          %s307 = scalar_lea.vmem [#allocation2], %s306
          %s308 = ssub.s32 %s31, 1
          %p309 = scmp.gt.s32.totalorder %s308, 0
          %s310 = scalar_select %p309, %s308, 0
          %s312 = ssub.s32 256, 256
          %313 = vsyncadd %s304, %s312
          %s314 = smul.addr %s30, 8
          %s315 = sadd.s32 %s310, %s314
          %s316 = smul.addr %s315, 128
          %s317 = scalar_lea.hbm %s0, %s316
          %s318 = sshll.u32 %s307, 4
          %s319 = int_to_ptr.vmem [resolvable:$true] %s318
          %324 = dma.hbm_to_vmem [thread:$0]  %s317, 256, %s319, %s304, 512, 128, 8
        $region36: #{tpu_custom_call.1} parent=31 // pred_fallthru
          _
        // Predicated region
        $region37: #{tpu_custom_call.1} parent=31 // pred_check
          %p325 = pneg %p91
        $region38: #{tpu_custom_call.1} parent=31 // pred_check_branch
          %327 = sbr.rel (%p325) target = $region40
        $region39: #{tpu_custom_call.1} parent=31 // pred_region
          %s328 = sand.u32 %s23, 1
          %s329 = scalar_lea.sflag [#allocation6], %s328
          %s330 = sand.u32 %s81, 1
          %s331 = smul.addr %s330, 16
          %s332 = scalar_lea.vmem [#allocation5], %s331
          %s334 = ssub.s32 256, 256
          %335 = vsyncadd %s329, %s334
          %s336 = smul.addr %s30, 8
          %s337 = sadd.s32 %s31, %s336
          %s338 = smul.addr %s337, 128
          %s339 = scalar_lea.hbm %s1, %s338
          %s340 = sshll.u32 %s332, 4
          %s341 = int_to_ptr.vmem [resolvable:$true] %s340
          %346 = dma.hbm_to_vmem [thread:$0]  %s339, 256, %s341, %s329, 512, 128, 8
        $region40: #{tpu_custom_call.1} parent=31 // pred_fallthru
          _
        // Predicated region
        $region41: #{tpu_custom_call.1} parent=31 // pred_check
          %p347 = pneg %p125
        $region42: #{tpu_custom_call.1} parent=31 // pred_check_branch
          %349 = sbr.rel (%p347) target = $region44
        $region43: #{tpu_custom_call.1} parent=31 // pred_region
          %s350 = sand.u32 %s23, 1
          %s351 = scalar_lea.sflag [#allocation6], %s350
          %s352 = sand.u32 %s115, 1
          %s353 = smul.addr %s352, 16
          %s354 = scalar_lea.vmem [#allocation7], %s353
          %s355 = sadd.s32 %s31, 1
          %p356 = scmp.lt.s32.totalorder %s355, 3
          %s357 = scalar_select %p356, %s355, 3
          %s359 = ssub.s32 256, 256
          %360 = vsyncadd %s351, %s359
          %s361 = smul.addr %s30, 8
          %s362 = sadd.s32 %s357, %s361
          %s363 = smul.addr %s362, 128
          %s364 = scalar_lea.hbm %s2, %s363
          %s365 = sshll.u32 %s354, 4
          %s366 = int_to_ptr.vmem [resolvable:$true] %s365
          %371 = dma.hbm_to_vmem [thread:$0]  %s364, 256, %s366, %s351, 512, 128, 8
        $region44: #{tpu_custom_call.1} parent=31 // pred_fallthru
          _
        // Predicated region
        $region45: #{tpu_custom_call.1} parent=31 // pred_check
          %p372 = pneg %p151
        $region46: #{tpu_custom_call.1} parent=31 // pred_check_branch
          %374 = sbr.rel (%p372) target = $region48
        $region47: #{tpu_custom_call.1} parent=31 // pred_region
          %p375 = scmp.lt.s32.totalorder %s31, 3
          %s376 = scalar_select %p375, %s31, 3
          %s377 = smul.addr %s376, 3
          %s378 = scalar_lea.vmem %s3, %s377
        $region48: #{tpu_custom_call.1} parent=31 // pred_fallthru
          _
      $region32: #{tpu_custom_call.1} parent=5 // pred_fallthru
        _
      %p379 = scmp.le.s32.totalorder 1, %s23
      %p380 = scmp.lt.s32.totalorder %s23, 9
      %p381 = pnand %p379, %p380
      %p382 = pneg %p381
      // Predicated region
      $region49: #{tpu_custom_call.1} parent=5 // pred_check
        _
      $region50: #{tpu_custom_call.1} parent=5 // pred_check_branch
        %384 = sbr.rel (%p381) target = $region52
      $region51: #{tpu_custom_call.1} parent=5 // pred_region
        %s385 = ssub.s32 %s23, 1
        %s386 = sand.u32 %s56, 1
        %s387 = scalar_lea.sflag [#allocation3], %s386
        %s388 = sand.u32 %s56, 1
        %s389 = smul.addr %s388, 16
        %s390 = scalar_lea.vmem [#allocation2], %s389
        // Predicated region
        $region53: #{tpu_custom_call.1} parent=51 // pred_check
          %p391 = pneg %p69
        $region54: #{tpu_custom_call.1} parent=51 // pred_check_branch
          %393 = sbr.rel (%p391) target = $region56
        $region55: #{tpu_custom_call.1} parent=51 // pred_region
          %394 = dma.done %s387, 256
        $region56: #{tpu_custom_call.1} parent=51 // pred_fallthru
          _
        %s395 = sand.u32 %s28, 1
        %s396 = scalar_lea.sflag [#allocation6], %s395
        %s397 = sand.u32 %s84, 1
        %s398 = smul.addr %s397, 16
        %s399 = scalar_lea.vmem [#allocation5], %s398
        // Predicated region
        $region57: #{tpu_custom_call.1} parent=51 // pred_check
          %p400 = pneg %p97
        $region58: #{tpu_custom_call.1} parent=51 // pred_check_branch
          %402 = sbr.rel (%p400) target = $region60
        $region59: #{tpu_custom_call.1} parent=51 // pred_region
          %403 = dma.done %s396, 256
        $region60: #{tpu_custom_call.1} parent=51 // pred_fallthru
          _
        %s404 = sand.u32 %s28, 1
        %s405 = scalar_lea.sflag [#allocation6], %s404
        %s406 = sand.u32 %s118, 1
        %s407 = smul.addr %s406, 16
        %s408 = scalar_lea.vmem [#allocation7], %s407
        // Predicated region
        $region61: #{tpu_custom_call.1} parent=51 // pred_check
          %p409 = pneg %p131
        $region62: #{tpu_custom_call.1} parent=51 // pred_check_branch
          %411 = sbr.rel (%p409) target = $region64
        $region63: #{tpu_custom_call.1} parent=51 // pred_region
          %412 = dma.done %s405, 256
        $region64: #{tpu_custom_call.1} parent=51 // pred_fallthru
          _
        %s413 = sand.u32 %s56, 1
        %s414 = scalar_lea.sflag [#allocation3], %s413
        %s415 = sand.u32 %s56, 1
        %s416 = smul.addr %s415, 16
        %s417 = scalar_lea.vmem [#allocation2], %s416
        %p418 = pneg %p69
        %p419 = pneg %p66
        %s420 = sand.u32 %s28, 1
        %s421 = scalar_lea.sflag [#allocation6], %s420
        %s422 = sand.u32 %s84, 1
        %s423 = smul.addr %s422, 16
        %s424 = scalar_lea.vmem [#allocation5], %s423
        %p425 = pneg %p97
        %p426 = pneg %p94
        %s427 = sand.u32 %s28, 1
        %s428 = scalar_lea.sflag [#allocation6], %s427
        %s429 = sand.u32 %s118, 1
        %s430 = smul.addr %s429, 16
        %s431 = scalar_lea.vmem [#allocation7], %s430
        %p432 = pneg %p131
        %p433 = pneg %p128
        %p434 = scmp.lt.s32.totalorder %s33, 3
        %s435 = scalar_select %p434, %s33, 3
        %s436 = smul.addr %s435, 3
        %s437 = scalar_lea.vmem %s3, %s436
        %p438 = pneg %p157
        %p439 = pneg %p154
        %p440 = pneg %p178
        %p441 = pneg %p175
        %p442 = pneg %p199
        %p443 = pneg %p196
        %p444 = pneg %p220
        %p445 = pneg %p217
        %p446 = pneg %p241
        %p447 = pneg %p238
        %p448 = pneg %p269
        %p449 = pneg %p266
        %s450 = sand.u32 %s256, 1
        %s451 = scalar_lea.sflag [#allocation4], %s450
        %s452 = sand.u32 %s256, 1
        %s453 = smul.addr %s452, 16
        %s454 = scalar_lea.vmem [#allocation8], %s453
        %s455 = ssub.s32 %s33, 1
        %p456 = scmp.gt.s32.totalorder %s455, 0
        %s457 = scalar_select %p456, %s455, 0
        %s458 = sadd.s32 %s33, 1
        %p459 = scmp.lt.s32.totalorder %s458, 3
        %s460 = scalar_select %p459, %s458, 3
        %p461 = scmp.lt.s32.totalorder %s33, 3
        %s462 = scalar_select %p461, %s33, 3
        %s463 = smul.addr %s462, 3
        %s464 = scalar_lea.vmem %s3, %s463
        %v465 = vld [vmem:[%s390] sm:$0xff]
        %v466 = vld [vmem:[%s390 + $0x8] sm:$0xff]
        %v467 = vld [vmem:[%s399] sm:$0xff]
        %v468 = vld [vmem:[%s399 + $0x8] sm:$0xff]
        %v469 = vld [vmem:[%s408] sm:$0xff]
        %v470 = vld [vmem:[%s408 + $0x8] sm:$0xff]
        %v471 = vld [vmem:[%s5] sm:$0xff]
        %v472 = vld [vmem:[%s5 + $0x8] sm:$0xff]
        %v473 = vld [vmem:[%s464] sm:$0x7]
        %v474 = vld [vmem:[%s4] sm:$0x7]
        %v475 = vld [vmem:[%s4 + $0x6] sm:$0x7]
        %v476 = vadd.f32 %v465, %v466
        %v477 = vrot.slane %v476, 4
        %v478 = vadd.f32 %v476, %v477
        %v479 = vrot.slane %v478, 2
        %v480 = vadd.f32 %v478, %v479
        %v481 = vrot.slane %v480, 1
        %v482 = vadd.f32 %v480, %v481
        %v483 = vadd.f32 %v467, %v468
        %v484 = vrot.slane %v483, 4
        %v485 = vadd.f32 %v483, %v484
        %v486 = vrot.slane %v485, 2
        %v487 = vadd.f32 %v485, %v486
        %v488 = vrot.slane %v487, 1
        %v489 = vadd.f32 %v487, %v488
        %v490 = vadd.f32 %v469, %v470
        %v491 = vrot.slane %v490, 4
        %v492 = vadd.f32 %v490, %v491
        %v493 = vrot.slane %v492, 2
        %v494 = vadd.f32 %v492, %v493
        %v495 = vrot.slane %v494, 1
        %v496 = vadd.f32 %v494, %v495
        %v497 = vrcp.pop 16.0
        %v498 = vmul.f32 %v482, %v497
        %v499 = vmul.f32 %v489, %v497
        %v500 = vmul.f32 %v496, %v497
        %v501 = vmul.f32 %v465, %v465
        %v502 = vmul.f32 %v467, %v467
        %v503 = vmul.f32 %v469, %v469
        %v504 = vmul.f32 %v466, %v466
        %v505 = vmul.f32 %v468, %v468
        %v506 = vmul.f32 %v470, %v470
        %v507 = vadd.f32 %v501, %v504
        %v508 = vrot.slane %v507, 4
        %v509 = vadd.f32 %v507, %v508
        %v510 = vrot.slane %v509, 2
        %v511 = vadd.f32 %v509, %v510
        %v512 = vrot.slane %v511, 1
        %v513 = vadd.f32 %v511, %v512
        %v514 = vadd.f32 %v502, %v505
        %v515 = vrot.slane %v514, 4
        %v516 = vadd.f32 %v514, %v515
        %v517 = vrot.slane %v516, 2
        %v518 = vadd.f32 %v516, %v517
        %v519 = vrot.slane %v518, 1
        %v520 = vadd.f32 %v518, %v519
        %v521 = vadd.f32 %v503, %v506
        %v522 = vrot.slane %v521, 4
        %v523 = vadd.f32 %v521, %v522
        %v524 = vrot.slane %v523, 2
        %v525 = vadd.f32 %v523, %v524
        %v526 = vrot.slane %v525, 1
        %v527 = vadd.f32 %v525, %v526
        %v528 = vmul.f32 %v513, %v497
        %v529 = vmul.f32 %v520, %v497
        %v530 = vmul.f32 %v527, %v497
        %v531 = vmul.f32 %v498, %v498
        %v532 = vmul.f32 %v499, %v499
        %v533 = vmul.f32 %v500, %v500
        %v534 = vsub.f32 %v528, %v531
        %v535 = vsub.f32 %v529, %v532
        %v536 = vsub.f32 %v530, %v533
        %v537 = vsub.f32 %v465, %v498
        %v538 = vsub.f32 %v467, %v499
        %v539 = vsub.f32 %v469, %v500
        %v540 = vsub.f32 %v466, %v498
        %v541 = vsub.f32 %v468, %v499
        %v542 = vsub.f32 %v470, %v500
        %v543 = vadd.f32 %v534, 1e-05
        %v544 = vadd.f32 %v535, 1e-05
        %v545 = vadd.f32 %v536, 1e-05
        %v546 = vrsqrt.pop %v543
        %v547 = vrsqrt.pop %v544
        %v548 = vrsqrt.pop %v545
        %v549 = vmul.f32 %v537, %v546
        %v550 = vmul.f32 %v538, %v547
        %v551 = vmul.f32 %v539, %v548
        %v552 = vmul.f32 %v540, %v546
        %v553 = vmul.f32 %v541, %v547
        %v554 = vmul.f32 %v542, %v548
        %556 = vset.pattern.permute.xlu0 0
        %557 = vperm.xlu0 %556, %v471
        %v558 = vpop.permute.xlu0 %557
        %561 = vset.pattern.permute.xlu0 0
        %562 = vperm.xlu0 %561, %v472
        %v563 = vpop.permute.xlu0 %562
        %v565 = vmul.f32 %v549, %v558
        %v566 = vmul.f32 %v550, %v558
        %v567 = vmul.f32 %v551, %v558
        %v568 = vmul.f32 %v552, %v563
        %v569 = vmul.f32 %v553, %v563
        %v570 = vmul.f32 %v554, %v563
        %v571 = vld [vmem:[%s6] sm:$0xff]
        %v572 = vld [vmem:[%s6 + $0x8] sm:$0xff]
        %v573 = vld [vmem:[%s7] sm:$0xff]
        %574 = vset.pattern.permute.xlu0 3
        %575 = vperm.xlu0 %574, %v471
        %v576 = vpop.permute.xlu0 %575
        %578 = vset.pattern.permute.xlu0 3
        %579 = vperm.xlu0 %578, %v472
        %v580 = vpop.permute.xlu0 %579
        %vm582 = vcmask 64512
        %v584 = vsel %vm582, %v571, 0
        %v587 = vsel %vm582, %v572, 0
        %589 = vmatprep.subr.mxu0 %v566
        %590 = vmatpush1.msra.mxu0 %v565
        %591 = vmatprep.subr.mxu0 0.0
        %592 = vmatpush1.msra.mxu0 0.0
        %593 = vmatprep.subr.mxu0 0.0
        %594 = vmatpush1.msra.mxu0 0.0
        %595 = vmatprep.subr.mxu0 0.0
        %596 = vmatpush1.msra.mxu0 0.0
        %597 = vmatprep.subr.mxu0 0.0
        %598 = vmatpush1.msra.mxu0 0.0
        %599 = vmatprep.subr.mxu0 0.0
        %600 = vmatpush1.msra.mxu0 0.0
        %601 = vmatprep.subr.mxu0 0.0
        %602 = vmatpush1.msra.mxu0 0.0
        %603 = vmatprep.subr.mxu0 0.0
        %604 = vmatpush1.msra.mxu0 0.0
        %605 = vmatprep.subr.mxu0 0.0
        %606 = vmatpush1.msra.mxu0 0.0
        %607 = vmatprep.subr.mxu0 0.0
        %608 = vmatpush1.msra.mxu0 0.0
        %609 = vmatprep.subr.mxu0 0.0
        %610 = vmatpush1.msra.mxu0 0.0
        %611 = vmatprep.subr.mxu0 0.0
        %612 = vmatpush1.msra.mxu0 0.0
        %613 = vmatprep.subr.mxu0 0.0
        %614 = vmatpush1.msra.mxu0 0.0
        %615 = vmatprep.subr.mxu0 0.0
        %616 = vmatpush1.msra.mxu0 0.0
        %617 = vmatprep.subr.mxu0 0.0
        %618 = vmatpush1.msra.mxu0 0.0
        %619 = vmatprep.subr.mxu0 0.0
        %620 = vmatpush1.msra.mxu0 0.0
        %621 = vmatprep.subr.mxu0 0.0
        %622 = vmatpush1.msra.mxu0 0.0
        %623 = vmatprep.subr.mxu0 0.0
        %624 = vmatpush1.msra.mxu0 0.0
        %625 = vmatprep.subr.mxu0 0.0
        %626 = vmatpush1.msra.mxu0 0.0
        %627 = vmatprep.subr.mxu0 0.0
        %628 = vmatpush1.msra.mxu0 0.0
        %629 = vmatprep.subr.mxu0 0.0
        %630 = vmatpush1.msra.mxu0 0.0
        %631 = vmatprep.subr.mxu0 0.0
        %632 = vmatpush1.msra.mxu0 0.0
        %633 = vmatprep.subr.mxu0 0.0
        %634 = vmatpush1.msra.mxu0 0.0
        %635 = vmatprep.subr.mxu0 0.0
        %636 = vmatpush1.msra.mxu0 0.0
        %637 = vmatprep.subr.mxu0 0.0
        %638 = vmatpush1.msra.mxu0 0.0
        %639 = vmatprep.subr.mxu0 0.0
        %640 = vmatpush1.msra.mxu0 0.0
        %641 = vmatprep.subr.mxu0 0.0
        %642 = vmatpush1.msra.mxu0 0.0
        %643 = vmatprep.subr.mxu0 0.0
        %644 = vmatpush1.msra.mxu0 0.0
        %645 = vmatprep.subr.mxu0 0.0
        %646 = vmatpush1.msra.mxu0 0.0
        %647 = vmatprep.subr.mxu0 0.0
        %648 = vmatpush1.msra.mxu0 0.0
        %649 = vmatprep.subr.mxu0 0.0
        %650 = vmatpush1.msra.mxu0 0.0
        %651 = vmatprep.subr.mxu0 0.0
        %652 = vmatpush1.msra.mxu0 0.0
        %653 = vmatprep.mubr.f32.mxu0 0.0
        %654 = vmatmul.mubr.f32.gmra.mrb[0].mxu0 %v584
        %v655 = vpop.f32.mrb[0].mxu0
        %v656 = vadd.f32 %v576, %v655
        %v657 = vpop.f32.mrb[0].mxu0
        %v658 = vadd.f32 %v576, %v657
        %659 = vmatprep.mubr.f32.mxu0 0.0
        %660 = vmatmul.mubr.f32.gmra.mrb[0].mxu0 %v587
        %v661 = vpop.f32.mrb[0].mxu0
        %v662 = vadd.f32 %v580, %v661
        %v663 = vpop.f32.mrb[0].mxu0
        %v664 = vadd.f32 %v580, %v663
        %665 = vdwg.mxu0
        %666 = vmatprep.subr.mxu0 0.0
        %667 = vmatpush1.msra.mxu0 %v567
        %668 = vmatprep.subr.mxu0 0.0
        %669 = vmatpush1.msra.mxu0 0.0
        %670 = vmatprep.subr.mxu0 0.0
        %671 = vmatpush1.msra.mxu0 0.0
        %672 = vmatprep.subr.mxu0 0.0
        %673 = vmatpush1.msra.mxu0 0.0
        %674 = vmatprep.subr.mxu0 0.0
        %675 = vmatpush1.msra.mxu0 0.0
        %676 = vmatprep.subr.mxu0 0.0
        %677 = vmatpush1.msra.mxu0 0.0
        %678 = vmatprep.subr.mxu0 0.0
        %679 = vmatpush1.msra.mxu0 0.0
        %680 = vmatprep.subr.mxu0 0.0
        %681 = vmatpush1.msra.mxu0 0.0
        %682 = vmatprep.subr.mxu0 0.0
        %683 = vmatpush1.msra.mxu0 0.0
        %684 = vmatprep.subr.mxu0 0.0
        %685 = vmatpush1.msra.mxu0 0.0
        %686 = vmatprep.subr.mxu0 0.0
        %687 = vmatpush1.msra.mxu0 0.0
        %688 = vmatprep.subr.mxu0 0.0
        %689 = vmatpush1.msra.mxu0 0.0
        %690 = vmatprep.subr.mxu0 0.0
        %691 = vmatpush1.msra.mxu0 0.0
        %692 = vmatprep.subr.mxu0 0.0
        %693 = vmatpush1.msra.mxu0 0.0
        %694 = vmatprep.subr.mxu0 0.0
        %695 = vmatpush1.msra.mxu0 0.0
        %696 = vmatprep.subr.mxu0 0.0
        %697 = vmatpush1.msra.mxu0 0.0
        %698 = vmatprep.subr.mxu0 0.0
        %699 = vmatpush1.msra.mxu0 0.0
        %700 = vmatprep.subr.mxu0 0.0
        %701 = vmatpush1.msra.mxu0 0.0
        %702 = vmatprep.subr.mxu0 0.0
        %703 = vmatpush1.msra.mxu0 0.0
        %704 = vmatprep.subr.mxu0 0.0
        %705 = vmatpush1.msra.mxu0 0.0
        %706 = vmatprep.subr.mxu0 0.0
        %707 = vmatpush1.msra.mxu0 0.0
        %708 = vmatprep.subr.mxu0 0.0
        %709 = vmatpush1.msra.mxu0 0.0
        %710 = vmatprep.subr.mxu0 0.0
        %711 = vmatpush1.msra.mxu0 0.0
        %712 = vmatprep.subr.mxu0 0.0
        %713 = vmatpush1.msra.mxu0 0.0
        %714 = vmatprep.subr.mxu0 0.0
        %715 = vmatpush1.msra.mxu0 0.0
        %716 = vmatprep.subr.mxu0 0.0
        %717 = vmatpush1.msra.mxu0 0.0
        %718 = vmatprep.subr.mxu0 0.0
        %719 = vmatpush1.msra.mxu0 0.0
        %720 = vmatprep.subr.mxu0 0.0
        %721 = vmatpush1.msra.mxu0 0.0
        %722 = vmatprep.subr.mxu0 0.0
        %723 = vmatpush1.msra.mxu0 0.0
        %724 = vmatprep.subr.mxu0 0.0
        %725 = vmatpush1.msra.mxu0 0.0
        %726 = vmatprep.subr.mxu0 0.0
        %727 = vmatpush1.msra.mxu0 0.0
        %728 = vmatprep.subr.mxu0 0.0
        %729 = vmatpush1.msra.mxu0 0.0
        %730 = vmatprep.mubr.f32.mxu0 0.0
        %731 = vmatmul.mubr.f32.gmra.mrb[0].mxu0 %v584
        %v732 = vpop.f32.mrb[0].mxu0
        %v733 = vadd.f32 %v576, %v732
        %v734 = vpop.f32.mrb[0].mxu0
        %735 = vmatprep.mubr.f32.mxu0 0.0
        %736 = vmatmul.mubr.f32.gmra.mrb[0].mxu0 %v587
        %v737 = vpop.f32.mrb[0].mxu0
        %v738 = vadd.f32 %v580, %v737
        %v739 = vpop.f32.mrb[0].mxu0
        %740 = vdwg.mxu0
        %v741 = vxor.u32 %v656, 2147483648
        %v742 = vxor.u32 %v658, 2147483648
        %v743 = vxor.u32 %v733, 2147483648
        %v744 = vxor.u32 %v662, 2147483648
        %v745 = vxor.u32 %v664, 2147483648
        %v746 = vxor.u32 %v738, 2147483648
        %v747 = vmul.f32 %v741, 1.442695
        %v748 = vpow.pop %v747
        %v749 = vmul.f32 %v742, 1.442695
        %v750 = vpow.pop %v749
        %v751 = vmul.f32 %v743, 1.442695
        %v752 = vpow.pop %v751
        %v753 = vmul.f32 %v744, 1.442695
        %v754 = vpow.pop %v753
        %v755 = vmul.f32 %v745, 1.442695
        %v756 = vpow.pop %v755
        %v757 = vmul.f32 %v746, 1.442695
        %v758 = vpow.pop %v757
        %v759 = vadd.f32 %v748, 1.0
        %v760 = vadd.f32 %v750, 1.0
        %v761 = vadd.f32 %v752, 1.0
        %v762 = vadd.f32 %v754, 1.0
        %v763 = vadd.f32 %v756, 1.0
        %v764 = vadd.f32 %v758, 1.0
        %v765 = vrcp.pop %v759
        %v766 = vmul.f32 1.0, %v765
        %v767 = vrcp.pop %v760
        %v768 = vmul.f32 1.0, %v767
        %v769 = vrcp.pop %v761
        %v770 = vmul.f32 1.0, %v769
        %v771 = vrcp.pop %v762
        %v772 = vmul.f32 1.0, %v771
        %v773 = vrcp.pop %v763
        %v774 = vmul.f32 1.0, %v773
        %v775 = vrcp.pop %v764
        %v776 = vmul.f32 1.0, %v775
        %v777 = vmul.f32 %v656, %v766
        %v778 = vmul.f32 %v658, %v768
        %v779 = vmul.f32 %v733, %v770
        %v780 = vmul.f32 %v662, %v772
        %v781 = vmul.f32 %v664, %v774
        %v782 = vmul.f32 %v738, %v776
        %783 = vset.pattern.permute.xlu0 4
        %784 = vperm.xlu0 %783, %v471
        %v785 = vpop.permute.xlu0 %784
        %vm787 = vcmask 130048
        %v789 = vsel %vm787, %v573, 0
        %791 = vmatprep.subr.mxu0 %v778
        %792 = vmatpush1.msra.mxu0 %v777
        %793 = vmatprep.subr.mxu0 %v781
        %794 = vmatpush1.msra.mxu0 %v780
        %795 = vmatprep.subr.mxu0 0.0
        %796 = vmatpush1.msra.mxu0 0.0
        %797 = vmatprep.subr.mxu0 0.0
        %798 = vmatpush1.msra.mxu0 0.0
        %799 = vmatprep.subr.mxu0 0.0
        %800 = vmatpush1.msra.mxu0 0.0
        %801 = vmatprep.subr.mxu0 0.0
        %802 = vmatpush1.msra.mxu0 0.0
        %803 = vmatprep.subr.mxu0 0.0
        %804 = vmatpush1.msra.mxu0 0.0
        %805 = vmatprep.subr.mxu0 0.0
        %806 = vmatpush1.msra.mxu0 0.0
        %807 = vmatprep.subr.mxu0 0.0
        %808 = vmatpush1.msra.mxu0 0.0
        %809 = vmatprep.subr.mxu0 0.0
        %810 = vmatpush1.msra.mxu0 0.0
        %811 = vmatprep.subr.mxu0 0.0
        %812 = vmatpush1.msra.mxu0 0.0
        %813 = vmatprep.subr.mxu0 0.0
        %814 = vmatpush1.msra.mxu0 0.0
        %815 = vmatprep.subr.mxu0 0.0
        %816 = vmatpush1.msra.mxu0 0.0
        %817 = vmatprep.subr.mxu0 0.0
        %818 = vmatpush1.msra.mxu0 0.0
        %819 = vmatprep.subr.mxu0 0.0
        %820 = vmatpush1.msra.mxu0 0.0
        %821 = vmatprep.subr.mxu0 0.0
        %822 = vmatpush1.msra.mxu0 0.0
        %823 = vmatprep.subr.mxu0 0.0
        %824 = vmatpush1.msra.mxu0 0.0
        %825 = vmatprep.subr.mxu0 0.0
        %826 = vmatpush1.msra.mxu0 0.0
        %827 = vmatprep.subr.mxu0 0.0
        %828 = vmatpush1.msra.mxu0 0.0
        %829 = vmatprep.subr.mxu0 0.0
        %830 = vmatpush1.msra.mxu0 0.0
        %831 = vmatprep.subr.mxu0 0.0
        %832 = vmatpush1.msra.mxu0 0.0
        %833 = vmatprep.subr.mxu0 0.0
        %834 = vmatpush1.msra.mxu0 0.0
        %835 = vmatprep.subr.mxu0 0.0
        %836 = vmatpush1.msra.mxu0 0.0
        %837 = vmatprep.subr.mxu0 0.0
        %838 = vmatpush1.msra.mxu0 0.0
        %839 = vmatprep.subr.mxu0 0.0
        %840 = vmatpush1.msra.mxu0 0.0
        %841 = vmatprep.subr.mxu0 0.0
        %842 = vmatpush1.msra.mxu0 0.0
        %843 = vmatprep.subr.mxu0 0.0
        %844 = vmatpush1.msra.mxu0 0.0
        %845 = vmatprep.subr.mxu0 0.0
        %846 = vmatpush1.msra.mxu0 0.0
        %847 = vmatprep.subr.mxu0 0.0
        %848 = vmatpush1.msra.mxu0 0.0
        %849 = vmatprep.subr.mxu0 0.0
        %850 = vmatpush1.msra.mxu0 0.0
        %851 = vmatprep.subr.mxu0 0.0
        %852 = vmatpush1.msra.mxu0 0.0
        %853 = vmatprep.subr.mxu0 0.0
        %854 = vmatpush1.msra.mxu0 0.0
        %855 = vmatprep.mubr.f32.mxu0 0.0
        %856 = vmatmul.mubr.f32.gmra.mrb[0].mxu0 %v789
        %v857 = vpop.f32.mrb[0].mxu0
        %v858 = vadd.f32 %v785, %v857
        %v859 = vpop.f32.mrb[0].mxu0
        %v860 = vadd.f32 %v785, %v859
        %861 = vdwg.mxu0
        %862 = vmatprep.subr.mxu0 0.0
        %863 = vmatpush1.msra.mxu0 %v779
        %864 = vmatprep.subr.mxu0 0.0
        %865 = vmatpush1.msra.mxu0 %v782
        %866 = vmatprep.subr.mxu0 0.0
        %867 = vmatpush1.msra.mxu0 0.0
        %868 = vmatprep.subr.mxu0 0.0
        %869 = vmatpush1.msra.mxu0 0.0
        %870 = vmatprep.subr.mxu0 0.0
        %871 = vmatpush1.msra.mxu0 0.0
        %872 = vmatprep.subr.mxu0 0.0
        %873 = vmatpush1.msra.mxu0 0.0
        %874 = vmatprep.subr.mxu0 0.0
        %875 = vmatpush1.msra.mxu0 0.0
        %876 = vmatprep.subr.mxu0 0.0
        %877 = vmatpush1.msra.mxu0 0.0
        %878 = vmatprep.subr.mxu0 0.0
        %879 = vmatpush1.msra.mxu0 0.0
        %880 = vmatprep.subr.mxu0 0.0
        %881 = vmatpush1.msra.mxu0 0.0
        %882 = vmatprep.subr.mxu0 0.0
        %883 = vmatpush1.msra.mxu0 0.0
        %884 = vmatprep.subr.mxu0 0.0
        %885 = vmatpush1.msra.mxu0 0.0
        %886 = vmatprep.subr.mxu0 0.0
        %887 = vmatpush1.msra.mxu0 0.0
        %888 = vmatprep.subr.mxu0 0.0
        %889 = vmatpush1.msra.mxu0 0.0
        %890 = vmatprep.subr.mxu0 0.0
        %891 = vmatpush1.msra.mxu0 0.0
        %892 = vmatprep.subr.mxu0 0.0
        %893 = vmatpush1.msra.mxu0 0.0
        %894 = vmatprep.subr.mxu0 0.0
        %895 = vmatpush1.msra.mxu0 0.0
        %896 = vmatprep.subr.mxu0 0.0
        %897 = vmatpush1.msra.mxu0 0.0
        %898 = vmatprep.subr.mxu0 0.0
        %899 = vmatpush1.msra.mxu0 0.0
        %900 = vmatprep.subr.mxu0 0.0
        %901 = vmatpush1.msra.mxu0 0.0
        %902 = vmatprep.subr.mxu0 0.0
        %903 = vmatpush1.msra.mxu0 0.0
        %904 = vmatprep.subr.mxu0 0.0
        %905 = vmatpush1.msra.mxu0 0.0
        %906 = vmatprep.subr.mxu0 0.0
        %907 = vmatpush1.msra.mxu0 0.0
        %908 = vmatprep.subr.mxu0 0.0
        %909 = vmatpush1.msra.mxu0 0.0
        %910 = vmatprep.subr.mxu0 0.0
        %911 = vmatpush1.msra.mxu0 0.0
        %912 = vmatprep.subr.mxu0 0.0
        %913 = vmatpush1.msra.mxu0 0.0
        %914 = vmatprep.subr.mxu0 0.0
        %915 = vmatpush1.msra.mxu0 0.0
        %916 = vmatprep.subr.mxu0 0.0
        %917 = vmatpush1.msra.mxu0 0.0
        %918 = vmatprep.subr.mxu0 0.0
        %919 = vmatpush1.msra.mxu0 0.0
        %920 = vmatprep.subr.mxu0 0.0
        %921 = vmatpush1.msra.mxu0 0.0
        %922 = vmatprep.subr.mxu0 0.0
        %923 = vmatpush1.msra.mxu0 0.0
        %924 = vmatprep.subr.mxu0 0.0
        %925 = vmatpush1.msra.mxu0 0.0
        %926 = vmatprep.mubr.f32.mxu0 0.0
        %927 = vmatmul.mubr.f32.gmra.mrb[0].mxu0 %v789
        %v928 = vpop.f32.mrb[0].mxu0
        %v929 = vadd.f32 %v785, %v928
        %v930 = vpop.f32.mrb[0].mxu0
        %931 = vdwg.mxu0
        %v935 = vrot.slane %v858, 1
        %v936 = vrot.slane %v860, 1
        %v937 = vrot.slane %v929, 1
        %v941 = vrot.slane %v858, 2
        %v942 = vrot.slane %v860, 2
        %v943 = vrot.slane %v929, 2
        %v947 = vrot.slane %v858, 3
        %v948 = vrot.slane %v860, 3
        %v949 = vrot.slane %v929, 3
        %v956 = vrot.slane %v568, 4
        %v957 = vrot.slane %v569, 4
        %v958 = vrot.slane %v570, 4
        %v962 = vrot.slane %v568, 5
        %v963 = vrot.slane %v569, 5
        %v964 = vrot.slane %v570, 5
        %v968 = vrot.slane %v568, 6
        %v969 = vrot.slane %v569, 6
        %v970 = vrot.slane %v570, 6
        %v974 = vrot.slane %v568, 7
        %v975 = vrot.slane %v569, 7
        %v976 = vrot.slane %v570, 7
        %v980 = vrot.slane %v858, 4
        %v981 = vrot.slane %v860, 4
        %v982 = vrot.slane %v929, 4
        %vm986 = vcmask 1040384
        %v987 = vsel %vm986, %v858, %v935
        %v988 = vsel %vm986, %v860, %v936
        %v989 = vsel %vm986, %v929, %v937
        %vm990 = vcmask 1041408
        %v991 = vsel %vm990, %v987, %v941
        %v992 = vsel %vm990, %v988, %v942
        %v993 = vsel %vm990, %v989, %v943
        %vm994 = vcmask 1042432
        %v995 = vsel %vm994, %v991, %v947
        %v996 = vsel %vm994, %v992, %v948
        %v997 = vsel %vm994, %v993, %v949
        %vm998 = vcmask 1043456
        %v999 = vsel %vm998, %v995, %v956
        %v1000 = vsel %vm998, %v996, %v957
        %v1001 = vsel %vm998, %v997, %v958
        %vm1002 = vcmask 1044480
        %v1003 = vsel %vm1002, %v999, %v962
        %v1004 = vsel %vm1002, %v1000, %v963
        %v1005 = vsel %vm1002, %v1001, %v964
        %vm1006 = vcmask 1045504
        %v1007 = vsel %vm1006, %v1003, %v968
        %v1008 = vsel %vm1006, %v1004, %v969
        %v1009 = vsel %vm1006, %v1005, %v970
        %vm1010 = vcmask 1046528
        %v1011 = vsel %vm1010, %v1007, %v974
        %v1012 = vsel %vm1010, %v1008, %v975
        %v1013 = vsel %vm1010, %v1009, %v976
        %v1014 = vsel %vm986, %v935, %v941
        %v1015 = vsel %vm986, %v936, %v942
        %v1016 = vsel %vm986, %v937, %v943
        %v1017 = vsel %vm990, %v1014, %v947
        %v1018 = vsel %vm990, %v1015, %v948
        %v1019 = vsel %vm990, %v1016, %v949
        %v1020 = vsel %vm994, %v1017, %v980
        %v1021 = vsel %vm994, %v1018, %v981
        %v1022 = vsel %vm994, %v1019, %v982
        %v1023 = vsel %vm998, %v1020, %v962
        %v1024 = vsel %vm998, %v1021, %v963
        %v1025 = vsel %vm998, %v1022, %v964
        %v1026 = vsel %vm1002, %v1023, %v968
        %v1027 = vsel %vm1002, %v1024, %v969
        %v1028 = vsel %vm1002, %v1025, %v970
        %v1029 = vsel %vm1006, %v1026, %v974
        %v1030 = vsel %vm1006, %v1027, %v975
        %v1031 = vsel %vm1006, %v1028, %v976
        %v1032 = vsel %vm1010, %v1029, %v568
        %v1033 = vsel %vm1010, %v1030, %v569
        %v1034 = vsel %vm1010, %v1031, %v570
        %v1035 = vadd.f32 %v1011, %v465
        %v1036 = vadd.f32 %v1012, %v467
        %v1037 = vadd.f32 %v1013, %v469
        %v1038 = vadd.f32 %v1032, %v466
        %v1039 = vadd.f32 %v1033, %v468
        %v1040 = vadd.f32 %v1034, %v470
        %v1042 = vlaneseq
        %v1043 = vshrl.u32 %v1042, 7
        %v1044 = vsub.s32 0, %v1043
        %v1045 = vrot.slane %v473, %v1044
        %v1046 = vlaneseq
        %v1047 = vshrl.u32 %v1046, 7
        %v1048 = vsub.s32 1, %v1047
        %v1049 = vrot.slane %v473, %v1048
        %v1050 = vlaneseq
        %v1051 = vshrl.u32 %v1050, 7
        %v1052 = vsub.s32 2, %v1051
        %v1053 = vrot.slane %v473, %v1052
        %v1057 = vmul.f32 %v1035, %v1045
        %v1058 = vmul.f32 %v1036, %v1049
        %v1059 = vmul.f32 %v1037, %v1053
        %v1060 = vmul.f32 %v1038, %v1045
        %v1061 = vmul.f32 %v1039, %v1049
        %v1062 = vmul.f32 %v1040, %v1053
        %1063 = vset.pattern.permute.xlu0 2
        %1064 = vperm.xlu0 %1063, %v471
        %v1065 = vpop.permute.xlu0 %1064
        %1067 = vset.pattern.permute.xlu0 2
        %1068 = vperm.xlu0 %1067, %v472
        %v1069 = vpop.permute.xlu0 %1068
        %1071 = vrot.lane.b32.xlu0 %v1057, 17
        %v1072 = vpop.permute.xlu0 %1071
        %1073 = vrot.lane.b32.xlu0 %v1060, 17
        %v1074 = vpop.permute.xlu0 %1073
        %1075 = vrot.lane.b32.xlu0 %v1058, 17
        %v1076 = vpop.permute.xlu0 %1075
        %1077 = vrot.lane.b32.xlu0 %v1061, 17
        %v1078 = vpop.permute.xlu0 %1077
        %v1079 = vlaneseq
        %v1080 = vand.u32 %v1079, 127
        %vm1081 = vcmp.lt.s32.totalorder %v1080, 17
        %v1082 = vsel %vm1081, %v1072, %v1076
        %v1083 = vsel %vm1081, %v1074, %v1078
        %1084 = vset.pattern.permute.xlu0 7
        %1085 = vperm.xlu0 %1084, %v471
        %v1086 = vpop.permute.xlu0 %1085
        %1088 = vset.pattern.permute.xlu0 7
        %1089 = vperm.xlu0 %1088, %v472
        %v1090 = vpop.permute.xlu0 %1089
        %v1092 = vmul.f32 %v1082, %v1086
        %v1093 = vmul.f32 %v1083, %v1090
        %v1095 = vlaneseq
        %v1096 = vshrl.u32 %v1095, 7
        %v1097 = vsub.s32 1, %v1096
        %v1098 = vrot.slane %v474, %v1097
        %v1100 = vmul.f32 %v1092, %v1098
        %v1101 = vmul.f32 %v1093, %v1098
        %v1102 = vadd.f32 %v1065, %v1100
        %v1103 = vadd.f32 %v1069, %v1101
        %1104 = vrot.lane.b32.xlu0 %v1057, 16
        %v1105 = vpop.permute.xlu0 %1104
        %1106 = vrot.lane.b32.xlu0 %v1060, 16
        %v1107 = vpop.permute.xlu0 %1106
        %1108 = vrot.lane.b32.xlu0 %v1058, 16
        %v1109 = vpop.permute.xlu0 %1108
        %1110 = vrot.lane.b32.xlu0 %v1061, 16
        %v1111 = vpop.permute.xlu0 %1110
        %vm1112 = vcmp.lt.s32.totalorder %v1080, 16
        %v1113 = vsel %vm1112, %v1105, %v1109
        %v1114 = vsel %vm1112, %v1107, %v1111
        %1115 = vset.pattern.permute.xlu0 8
        %1116 = vperm.xlu0 %1115, %v471
        %v1117 = vpop.permute.xlu0 %1116
        %1119 = vset.pattern.permute.xlu0 8
        %1120 = vperm.xlu0 %1119, %v472
        %v1121 = vpop.permute.xlu0 %1120
        %v1123 = vmul.f32 %v1113, %v1117
        %v1124 = vmul.f32 %v1114, %v1121
        %v1125 = vadd.f32 %v1102, %v1123
        %v1126 = vadd.f32 %v1103, %v1124
        %1127 = vrot.lane.b32.xlu0 %v1057, 15
        %v1128 = vpop.permute.xlu0 %1127
        %1129 = vrot.lane.b32.xlu0 %v1060, 15
        %v1130 = vpop.permute.xlu0 %1129
        %1131 = vrot.lane.b32.xlu0 %v1058, 15
        %v1132 = vpop.permute.xlu0 %1131
        %1133 = vrot.lane.b32.xlu0 %v1061, 15
        %v1134 = vpop.permute.xlu0 %1133
        %vm1135 = vcmp.lt.s32.totalorder %v1080, 15
        %v1136 = vsel %vm1135, %v1128, %v1132
        %v1137 = vsel %vm1135, %v1130, %v1134
        %1138 = vset.pattern.permute.xlu0 9
        %1139 = vperm.xlu0 %1138, %v471
        %v1140 = vpop.permute.xlu0 %1139
        %1142 = vset.pattern.permute.xlu0 9
        %1143 = vperm.xlu0 %1142, %v472
        %v1144 = vpop.permute.xlu0 %1143
        %v1146 = vmul.f32 %v1136, %v1140
        %v1147 = vmul.f32 %v1137, %v1144
        %v1149 = vlaneseq
        %v1150 = vshrl.u32 %v1149, 7
        %v1151 = vsub.s32 1, %v1150
        %v1152 = vrot.slane %v475, %v1151
        %v1154 = vmul.f32 %v1146, %v1152
        %v1155 = vmul.f32 %v1147, %v1152
        %v1156 = vadd.f32 %v1125, %v1154
        %v1157 = vadd.f32 %v1126, %v1155
        %1158 = vrot.lane.b32.xlu0 %v1057, 1
        %v1159 = vpop.permute.xlu0 %1158
        %1160 = vrot.lane.b32.xlu0 %v1060, 1
        %v1161 = vpop.permute.xlu0 %1160
        %1162 = vrot.lane.b32.xlu0 %v1058, 1
        %v1163 = vpop.permute.xlu0 %1162
        %1164 = vrot.lane.b32.xlu0 %v1061, 1
        %v1165 = vpop.permute.xlu0 %1164
        %vm1166 = vcmp.lt.s32.totalorder %v1080, 1
        %v1167 = vsel %vm1166, %v1159, %v1163
        %v1168 = vsel %vm1166, %v1161, %v1165
        %1169 = vset.pattern.permute.xlu0 10
        %1170 = vperm.xlu0 %1169, %v471
        %v1171 = vpop.permute.xlu0 %1170
        %1173 = vset.pattern.permute.xlu0 10
        %1174 = vperm.xlu0 %1173, %v472
        %v1175 = vpop.permute.xlu0 %1174
        %v1177 = vmul.f32 %v1167, %v1171
        %v1178 = vmul.f32 %v1168, %v1175
        %v1179 = vmul.f32 %v1177, %v1098
        %v1180 = vmul.f32 %v1178, %v1098
        %v1181 = vadd.f32 %v1156, %v1179
        %v1182 = vadd.f32 %v1157, %v1180
        %1183 = vset.pattern.permute.xlu0 11
        %1184 = vperm.xlu0 %1183, %v471
        %v1185 = vpop.permute.xlu0 %1184
        %1187 = vset.pattern.permute.xlu0 11
        %1188 = vperm.xlu0 %1187, %v472
        %v1189 = vpop.permute.xlu0 %1188
        %v1191 = vmul.f32 %v1058, %v1185
        %v1192 = vmul.f32 %v1061, %v1189
        %v1193 = vadd.f32 %v1181, %v1191
        %v1194 = vadd.f32 %v1182, %v1192
        %1195 = vrot.lane.b32.xlu0 %v1058, 127
        %v1196 = vpop.permute.xlu0 %1195
        %1197 = vrot.lane.b32.xlu0 %v1061, 127
        %v1198 = vpop.permute.xlu0 %1197
        %1199 = vrot.lane.b32.xlu0 %v1059, 127
        %v1200 = vpop.permute.xlu0 %1199
        %1201 = vrot.lane.b32.xlu0 %v1062, 127
        %v1202 = vpop.permute.xlu0 %1201
        %vm1203 = vcmp.lt.s32.totalorder %v1080, 127
        %v1204 = vsel %vm1203, %v1196, %v1200
        %v1205 = vsel %vm1203, %v1198, %v1202
        %1206 = vset.pattern.permute.xlu0 12
        %1207 = vperm.xlu0 %1206, %v471
        %v1208 = vpop.permute.xlu0 %1207
        %1210 = vset.pattern.permute.xlu0 12
        %1211 = vperm.xlu0 %1210, %v472
        %v1212 = vpop.permute.xlu0 %1211
        %v1214 = vmul.f32 %v1204, %v1208
        %v1215 = vmul.f32 %v1205, %v1212
        %v1216 = vmul.f32 %v1214, %v1152
        %v1217 = vmul.f32 %v1215, %v1152
        %v1218 = vadd.f32 %v1193, %v1216
        %v1219 = vadd.f32 %v1194, %v1217
        %1220 = vrot.lane.b32.xlu0 %v1058, 113
        %v1221 = vpop.permute.xlu0 %1220
        %1222 = vrot.lane.b32.xlu0 %v1061, 113
        %v1223 = vpop.permute.xlu0 %1222
        %1224 = vrot.lane.b32.xlu0 %v1059, 113
        %v1225 = vpop.permute.xlu0 %1224
        %1226 = vrot.lane.b32.xlu0 %v1062, 113
        %v1227 = vpop.permute.xlu0 %1226
        %vm1228 = vcmp.lt.s32.totalorder %v1080, 113
        %v1229 = vsel %vm1228, %v1221, %v1225
        %v1230 = vsel %vm1228, %v1223, %v1227
        %1231 = vset.pattern.permute.xlu0 13
        %1232 = vperm.xlu0 %1231, %v471
        %v1233 = vpop.permute.xlu0 %1232
        %1235 = vset.pattern.permute.xlu0 13
        %1236 = vperm.xlu0 %1235, %v472
        %v1237 = vpop.permute.xlu0 %1236
        %v1239 = vmul.f32 %v1229, %v1233
        %v1240 = vmul.f32 %v1230, %v1237
        %v1241 = vmul.f32 %v1239, %v1098
        %v1242 = vmul.f32 %v1240, %v1098
        %v1243 = vadd.f32 %v1218, %v1241
        %v1244 = vadd.f32 %v1219, %v1242
        %1245 = vrot.lane.b32.xlu0 %v1058, 112
        %v1246 = vpop.permute.xlu0 %1245
        %1247 = vrot.lane.b32.xlu0 %v1061, 112
        %v1248 = vpop.permute.xlu0 %1247
        %1249 = vrot.lane.b32.xlu0 %v1059, 112
        %v1250 = vpop.permute.xlu0 %1249
        %1251 = vrot.lane.b32.xlu0 %v1062, 112
        %v1252 = vpop.permute.xlu0 %1251
        %vm1253 = vcmp.lt.s32.totalorder %v1080, 112
        %v1254 = vsel %vm1253, %v1246, %v1250
        %v1255 = vsel %vm1253, %v1248, %v1252
        %1256 = vset.pattern.permute.xlu0 14
        %1257 = vperm.xlu0 %1256, %v471
        %v1258 = vpop.permute.xlu0 %1257
        %1260 = vset.pattern.permute.xlu0 14
        %1261 = vperm.xlu0 %1260, %v472
        %v1262 = vpop.permute.xlu0 %1261
        %v1264 = vmul.f32 %v1254, %v1258
        %v1265 = vmul.f32 %v1255, %v1262
        %v1266 = vadd.f32 %v1243, %v1264
        %v1267 = vadd.f32 %v1244, %v1265
        %1268 = vrot.lane.b32.xlu0 %v1058, 111
        %v1269 = vpop.permute.xlu0 %1268
        %1270 = vrot.lane.b32.xlu0 %v1061, 111
        %v1271 = vpop.permute.xlu0 %1270
        %1272 = vrot.lane.b32.xlu0 %v1059, 111
        %v1273 = vpop.permute.xlu0 %1272
        %1274 = vrot.lane.b32.xlu0 %v1062, 111
        %v1275 = vpop.permute.xlu0 %1274
        %vm1276 = vcmp.lt.s32.totalorder %v1080, 111
        %v1277 = vsel %vm1276, %v1269, %v1273
        %v1278 = vsel %vm1276, %v1271, %v1275
        %1279 = vset.pattern.permute.xlu0 15
        %1280 = vperm.xlu0 %1279, %v471
        %v1281 = vpop.permute.xlu0 %1280
        %1283 = vset.pattern.permute.xlu0 15
        %1284 = vperm.xlu0 %1283, %v472
        %v1285 = vpop.permute.xlu0 %1284
        %v1287 = vmul.f32 %v1277, %v1281
        %v1288 = vmul.f32 %v1278, %v1285
        %v1289 = vmul.f32 %v1287, %v1152
        %v1290 = vmul.f32 %v1288, %v1152
        %v1291 = vadd.f32 %v1266, %v1289
        %v1292 = vadd.f32 %v1267, %v1290
        %v1293 = vadd.f32 %v1291, %v1292
        %v1294 = vrot.slane %v1293, 4
        %v1295 = vadd.f32 %v1293, %v1294
        %v1296 = vrot.slane %v1295, 2
        %v1297 = vadd.f32 %v1295, %v1296
        %v1298 = vrot.slane %v1297, 1
        %v1299 = vadd.f32 %v1297, %v1298
        %v1300 = vmul.f32 %v1299, %v497
        %v1301 = vmul.f32 %v1291, %v1291
        %v1302 = vmul.f32 %v1292, %v1292
        %v1303 = vadd.f32 %v1301, %v1302
        %v1304 = vrot.slane %v1303, 4
        %v1305 = vadd.f32 %v1303, %v1304
        %v1306 = vrot.slane %v1305, 2
        %v1307 = vadd.f32 %v1305, %v1306
        %v1308 = vrot.slane %v1307, 1
        %v1309 = vadd.f32 %v1307, %v1308
        %v1310 = vmul.f32 %v1309, %v497
        %v1311 = vmul.f32 %v1300, %v1300
        %v1312 = vsub.f32 %v1310, %v1311
        %v1313 = vsub.f32 %v1291, %v1300
        %v1314 = vsub.f32 %v1292, %v1300
        %v1315 = vadd.f32 %v1312, 1e-05
        %v1316 = vrsqrt.pop %v1315
        %v1317 = vmul.f32 %v1313, %v1316
        %v1318 = vmul.f32 %v1314, %v1316
        %1319 = vset.pattern.permute.xlu0 1
        %1320 = vperm.xlu0 %1319, %v471
        %v1321 = vpop.permute.xlu0 %1320
        %1323 = vset.pattern.permute.xlu0 1
        %1324 = vperm.xlu0 %1323, %v472
        %v1325 = vpop.permute.xlu0 %1324
        %v1327 = vmul.f32 %v1317, %v1321
        %v1328 = vmul.f32 %v1318, %v1325
        %s1329 = scalar_lea.vmem %s6, 16
        %v1330 = vld [vmem:[%s1329] sm:$0xff]
        %v1331 = vld [vmem:[%s1329 + $0x8] sm:$0xff]
        %s1332 = scalar_lea.vmem %s7, 8
        %v1333 = vld [vmem:[%s1332] sm:$0xff]
        %1334 = vset.pattern.permute.xlu0 5
        %1335 = vperm.xlu0 %1334, %v471
        %v1336 = vpop.permute.xlu0 %1335
        %1338 = vset.pattern.permute.xlu0 5
        %1339 = vperm.xlu0 %1338, %v472
        %v1340 = vpop.permute.xlu0 %1339
        %v1343 = vsel %vm582, %v1330, 0
        %v1346 = vsel %vm582, %v1331, 0
        %1348 = vmatprep.subr.mxu0 0.0
        %1349 = vmatpush1.msra.mxu0 %v1327
        %1350 = vmatprep.subr.mxu0 0.0
        %1351 = vmatpush1.msra.mxu0 0.0
        %1352 = vmatprep.subr.mxu0 0.0
        %1353 = vmatpush1.msra.mxu0 0.0
        %1354 = vmatprep.subr.mxu0 0.0
        %1355 = vmatpush1.msra.mxu0 0.0
        %1356 = vmatprep.subr.mxu0 0.0
        %1357 = vmatpush1.msra.mxu0 0.0
        %1358 = vmatprep.subr.mxu0 0.0
        %1359 = vmatpush1.msra.mxu0 0.0
        %1360 = vmatprep.subr.mxu0 0.0
        %1361 = vmatpush1.msra.mxu0 0.0
        %1362 = vmatprep.subr.mxu0 0.0
        %1363 = vmatpush1.msra.mxu0 0.0
        %1364 = vmatprep.subr.mxu0 0.0
        %1365 = vmatpush1.msra.mxu0 0.0
        %1366 = vmatprep.subr.mxu0 0.0
        %1367 = vmatpush1.msra.mxu0 0.0
        %1368 = vmatprep.subr.mxu0 0.0
        %1369 = vmatpush1.msra.mxu0 0.0
        %1370 = vmatprep.subr.mxu0 0.0
        %1371 = vmatpush1.msra.mxu0 0.0
        %1372 = vmatprep.subr.mxu0 0.0
        %1373 = vmatpush1.msra.mxu0 0.0
        %1374 = vmatprep.subr.mxu0 0.0
        %1375 = vmatpush1.msra.mxu0 0.0
        %1376 = vmatprep.subr.mxu0 0.0
        %1377 = vmatpush1.msra.mxu0 0.0
        %1378 = vmatprep.subr.mxu0 0.0
        %1379 = vmatpush1.msra.mxu0 0.0
        %1380 = vmatprep.subr.mxu0 0.0
        %1381 = vmatpush1.msra.mxu0 0.0
        %1382 = vmatprep.subr.mxu0 0.0
        %1383 = vmatpush1.msra.mxu0 0.0
        %1384 = vmatprep.subr.mxu0 0.0
        %1385 = vmatpush1.msra.mxu0 0.0
        %1386 = vmatprep.subr.mxu0 0.0
        %1387 = vmatpush1.msra.mxu0 0.0
        %1388 = vmatprep.subr.mxu0 0.0
        %1389 = vmatpush1.msra.mxu0 0.0
        %1390 = vmatprep.subr.mxu0 0.0
        %1391 = vmatpush1.msra.mxu0 0.0
        %1392 = vmatprep.subr.mxu0 0.0
        %1393 = vmatpush1.msra.mxu0 0.0
        %1394 = vmatprep.subr.mxu0 0.0
        %1395 = vmatpush1.msra.mxu0 0.0
        %1396 = vmatprep.subr.mxu0 0.0
        %1397 = vmatpush1.msra.mxu0 0.0
        %1398 = vmatprep.subr.mxu0 0.0
        %1399 = vmatpush1.msra.mxu0 0.0
        %1400 = vmatprep.subr.mxu0 0.0
        %1401 = vmatpush1.msra.mxu0 0.0
        %1402 = vmatprep.subr.mxu0 0.0
        %1403 = vmatpush1.msra.mxu0 0.0
        %1404 = vmatprep.subr.mxu0 0.0
        %1405 = vmatpush1.msra.mxu0 0.0
        %1406 = vmatprep.subr.mxu0 0.0
        %1407 = vmatpush1.msra.mxu0 0.0
        %1408 = vmatprep.subr.mxu0 0.0
        %1409 = vmatpush1.msra.mxu0 0.0
        %1410 = vmatprep.subr.mxu0 0.0
        %1411 = vmatpush1.msra.mxu0 0.0
        %1412 = vmatprep.mubr.f32.mxu0 0.0
        %1413 = vmatmul.mubr.f32.gmra.mrb[0].mxu0 %v1343
        %v1414 = vpop.f32.mrb[0].mxu0
        %v1415 = vadd.f32 %v1336, %v1414
        %v1416 = vpop.f32.mrb[0].mxu0
        %1417 = vmatprep.mubr.f32.mxu0 0.0
        %1418 = vmatmul.mubr.f32.gmra.mrb[0].mxu0 %v1346
        %v1419 = vpop.f32.mrb[0].mxu0
        %v1420 = vadd.f32 %v1340, %v1419
        %v1421 = vpop.f32.mrb[0].mxu0
        %1422 = vdwg.mxu0
        %v1423 = vxor.u32 %v1415, 2147483648
        %v1424 = vxor.u32 %v1420, 2147483648
        %v1425 = vmul.f32 %v1423, 1.442695
        %v1426 = vpow.pop %v1425
        %v1427 = vmul.f32 %v1424, 1.442695
        %v1428 = vpow.pop %v1427
        %v1429 = vadd.f32 %v1426, 1.0
        %v1430 = vadd.f32 %v1428, 1.0
        %v1431 = vrcp.pop %v1429
        %v1432 = vmul.f32 1.0, %v1431
        %v1433 = vrcp.pop %v1430
        %v1434 = vmul.f32 1.0, %v1433
        %v1435 = vmul.f32 %v1415, %v1432
        %v1436 = vmul.f32 %v1420, %v1434
        %1437 = vset.pattern.permute.xlu0 6
        %1438 = vperm.xlu0 %1437, %v471
        %v1439 = vpop.permute.xlu0 %1438
        %v1442 = vsel %vm787, %v1333, 0
        %1444 = vmatprep.subr.mxu0 0.0
        %1445 = vmatpush1.msra.mxu0 %v1435
        %1446 = vmatprep.subr.mxu0 0.0
        %1447 = vmatpush1.msra.mxu0 %v1436
        %1448 = vmatprep.subr.mxu0 0.0
        %1449 = vmatpush1.msra.mxu0 0.0
        %1450 = vmatprep.subr.mxu0 0.0
        %1451 = vmatpush1.msra.mxu0 0.0
        %1452 = vmatprep.subr.mxu0 0.0
        %1453 = vmatpush1.msra.mxu0 0.0
        %1454 = vmatprep.subr.mxu0 0.0
        %1455 = vmatpush1.msra.mxu0 0.0
        %1456 = vmatprep.subr.mxu0 0.0
        %1457 = vmatpush1.msra.mxu0 0.0
        %1458 = vmatprep.subr.mxu0 0.0
        %1459 = vmatpush1.msra.mxu0 0.0
        %1460 = vmatprep.subr.mxu0 0.0
        %1461 = vmatpush1.msra.mxu0 0.0
        %1462 = vmatprep.subr.mxu0 0.0
        %1463 = vmatpush1.msra.mxu0 0.0
        %1464 = vmatprep.subr.mxu0 0.0
        %1465 = vmatpush1.msra.mxu0 0.0
        %1466 = vmatprep.subr.mxu0 0.0
        %1467 = vmatpush1.msra.mxu0 0.0
        %1468 = vmatprep.subr.mxu0 0.0
        %1469 = vmatpush1.msra.mxu0 0.0
        %1470 = vmatprep.subr.mxu0 0.0
        %1471 = vmatpush1.msra.mxu0 0.0
        %1472 = vmatprep.subr.mxu0 0.0
        %1473 = vmatpush1.msra.mxu0 0.0
        %1474 = vmatprep.subr.mxu0 0.0
        %1475 = vmatpush1.msra.mxu0 0.0
        %1476 = vmatprep.subr.mxu0 0.0
        %1477 = vmatpush1.msra.mxu0 0.0
        %1478 = vmatprep.subr.mxu0 0.0
        %1479 = vmatpush1.msra.mxu0 0.0
        %1480 = vmatprep.subr.mxu0 0.0
        %1481 = vmatpush1.msra.mxu0 0.0
        %1482 = vmatprep.subr.mxu0 0.0
        %1483 = vmatpush1.msra.mxu0 0.0
        %1484 = vmatprep.subr.mxu0 0.0
        %1485 = vmatpush1.msra.mxu0 0.0
        %1486 = vmatprep.subr.mxu0 0.0
        %1487 = vmatpush1.msra.mxu0 0.0
        %1488 = vmatprep.subr.mxu0 0.0
        %1489 = vmatpush1.msra.mxu0 0.0
        %1490 = vmatprep.subr.mxu0 0.0
        %1491 = vmatpush1.msra.mxu0 0.0
        %1492 = vmatprep.subr.mxu0 0.0
        %1493 = vmatpush1.msra.mxu0 0.0
        %1494 = vmatprep.subr.mxu0 0.0
        %1495 = vmatpush1.msra.mxu0 0.0
        %1496 = vmatprep.subr.mxu0 0.0
        %1497 = vmatpush1.msra.mxu0 0.0
        %1498 = vmatprep.subr.mxu0 0.0
        %1499 = vmatpush1.msra.mxu0 0.0
        %1500 = vmatprep.subr.mxu0 0.0
        %1501 = vmatpush1.msra.mxu0 0.0
        %1502 = vmatprep.subr.mxu0 0.0
        %1503 = vmatpush1.msra.mxu0 0.0
        %1504 = vmatprep.subr.mxu0 0.0
        %1505 = vmatpush1.msra.mxu0 0.0
        %1506 = vmatprep.subr.mxu0 0.0
        %1507 = vmatpush1.msra.mxu0 0.0
        %1508 = vmatprep.mubr.f32.mxu0 0.0
        %1509 = vmatmul.mubr.f32.gmra.mrb[0].mxu0 %v1442
        %v1510 = vpop.f32.mrb[0].mxu0
        %v1511 = vadd.f32 %v1439, %v1510
        %v1512 = vpop.f32.mrb[0].mxu0
        %1513 = vdwg.mxu0
        %v1515 = vrot.slane %v1511, 1
        %v1517 = vrot.slane %v1511, 2
        %v1519 = vrot.slane %v1511, 3
        %v1522 = vrot.slane %v1328, 4
        %v1524 = vrot.slane %v1328, 5
        %v1526 = vrot.slane %v1328, 6
        %v1528 = vrot.slane %v1328, 7
        %v1530 = vrot.slane %v1511, 4
        %v1532 = vsel %vm986, %v1511, %v1515
        %v1533 = vsel %vm990, %v1532, %v1517
        %v1534 = vsel %vm994, %v1533, %v1519
        %v1535 = vsel %vm998, %v1534, %v1522
        %v1536 = vsel %vm1002, %v1535, %v1524
        %v1537 = vsel %vm1006, %v1536, %v1526
        %v1538 = vsel %vm1010, %v1537, %v1528
        %v1539 = vsel %vm986, %v1515, %v1517
        %v1540 = vsel %vm990, %v1539, %v1519
        %v1541 = vsel %vm994, %v1540, %v1530
        %v1542 = vsel %vm998, %v1541, %v1524
        %v1543 = vsel %vm1002, %v1542, %v1526
        %v1544 = vsel %vm1006, %v1543, %v1528
        %v1545 = vsel %vm1010, %v1544, %v1328
        %v1546 = vadd.f32 %v1538, %v1291
        %v1547 = vadd.f32 %v1545, %v1292
        %1548 = vst [vmem:[%s454] sm:$0xff] %v1546
        %1549 = vst [vmem:[%s454 + $0x8] sm:$0xff] %v1547
        %s1550 = sand.u32 %s256, 1
        %s1551 = scalar_lea.sflag [#allocation4], %s1550
        %s1552 = sand.u32 %s256, 1
        %s1553 = smul.addr %s1552, 16
        %s1554 = scalar_lea.vmem [#allocation8], %s1553
        // Predicated region
        $region65: #{tpu_custom_call.1} parent=51 // pred_check
          %p1555 = pneg %p266
        $region66: #{tpu_custom_call.1} parent=51 // pred_check_branch
          %1557 = sbr.rel (%p1555) target = $region68
        $region67: #{tpu_custom_call.1} parent=51 // pred_region
          %s1559 = ssub.s32 256, 256
          %1560 = vsyncadd %s1551, %s1559
          %s1561 = smul.addr %s32, 8
          %s1562 = sadd.s32 %s33, %s1561
          %s1563 = smul.addr %s1562, 128
          %s1564 = scalar_lea.hbm %s8, %s1563
          %s1565 = sshll.u32 %s1554, 4
          %s1566 = int_to_ptr.vmem [resolvable:$true] %s1565
          %1571 = dma.vmem_to_hbm [thread:$0]  %s1566, 256, %s1564, %s1551, 128, 512, 8
        $region68: #{tpu_custom_call.1} parent=51 // pred_fallthru
          _
      $region52: #{tpu_custom_call.1} parent=5 // pred_fallthru
        _
      %p1572 = scmp.le.s32.totalorder 2, %s23
      // Predicated region
      $region69: #{tpu_custom_call.1} parent=5 // pred_check
        %p1573 = pneg %p1572
      $region70: #{tpu_custom_call.1} parent=5 // pred_check_branch
        %1575 = sbr.rel (%p1573) target = $region72
      $region71: #{tpu_custom_call.1} parent=5 // pred_region
        %s1576 = ssub.s32 %s23, 2
        // Predicated region
        $region73: #{tpu_custom_call.1} parent=71 // pred_check
          %p1577 = pneg %p272
        $region74: #{tpu_custom_call.1} parent=71 // pred_check_branch
          %1579 = sbr.rel (%p1577) target = $region76
        $region75: #{tpu_custom_call.1} parent=71 // pred_region
          %s1580 = sand.u32 %s257, 1
          %s1581 = scalar_lea.sflag [#allocation4], %s1580
          %s1582 = sand.u32 %s257, 1
          %s1583 = smul.addr %s1582, 16
          %s1584 = scalar_lea.vmem [#allocation8], %s1583
          %1585 = dma.done %s1581, 256
        $region76: #{tpu_custom_call.1} parent=71 // pred_fallthru
          _
      $region72: #{tpu_custom_call.1} parent=5 // pred_fallthru
        _
    $region6: #{tpu_custom_call.1} parent=1 // loop_footer
      %s27 = sadd.s32 1, %s23
    $region7: #{tpu_custom_call.1} parent=1 // loop_footer_branch
      %22 = sbr.rel target = $region3
    $region8: #{tpu_custom_call.1} parent=1 // loop_exit
      _
    %1586 = vsyncpa [#allocation3], 1
    %s1587 = scalar_lea.sflag [#allocation3], 1
    %1588 = vsyncpa %s1587, 1
    %1589 = vsyncpa [#allocation6], 1
    %s1590 = scalar_lea.sflag [#allocation6], 1
    %1591 = vsyncpa %s1590, 1
    %1592 = vsyncpa [#allocation4], 1
    %s1593 = scalar_lea.sflag [#allocation4], 1
    %1594 = vsyncpa %s1593, 1

</llo_original>
